<compile_context>
chip_gen: v5e
topology: v5e:2x2
jax: 0.10.0
libtpu: 0.0.40
codegen_flags: <defaults>
</compile_context>

<pallas_src>
import numpy as np
import jax
import jax.numpy as jnp
from jax import lax
from jax.experimental import pallas as pl
from jax.experimental.pallas import tpu as pltpu

L_MODEL = 32     # l_model (LSTM input size)
D_MODEL = 32     # d_model (LSTM hidden size / LayerNorm width)
EPS = 1e-5       # nn.LayerNorm default eps


def _lstm_ln_kernel(x_ref, p_ref, out_ref):
    """Whole sequence in one invocation: 2 stacked LSTM layers + LayerNorm."""
    TB, L = x_ref.shape
    B = out_ref.shape[0]
    D = p_ref.shape[1] // 4
    T = TB // B

    # ---- unpack the packed parameter slab (static row slices, zero-cost views) ----
    wih0 = p_ref[0:L, :]                              # (L,  4D)
    whh0 = p_ref[L:L + D, :]                          # (D,  4D)
    w1   = p_ref[L + D:L + 3 * D, :]                  # (2D, 4D) = [wih1; whh1]
    b0   = p_ref[L + 3 * D:L + 3 * D + 1, :]          # (1, 4D) = b_ih0 + b_hh0
    b1   = p_ref[L + 3 * D + 1:L + 3 * D + 2, :]      # (1, 4D) = b_ih1 + b_hh1
    gb   = p_ref[L + 3 * D + 2:L + 3 * D + 3, :]      # (1, 4D) = [gamma | beta | 0]

    # Loop-invariant broadcasts, hoisted out of the time loop.
    b1_b    = jnp.broadcast_to(b1, (B, 4 * D))
    gamma_b = jnp.broadcast_to(gb[:, 0:D], (B, D))
    beta_b  = jnp.broadcast_to(gb[:, D:2 * D], (B, D))

    # Batched layer-0 input projection for every time step in one MXU matmul,
    # with the layer-0 bias folded in.
    xw = (jnp.dot(x_ref[...], wih0, preferred_element_type=jnp.float32)
          + jnp.broadcast_to(b0, (TB, 4 * D)))

    def split_gates(gates):
        # Nonlinearities on the full (B, 4D = 128)-lane vreg, then slice i/f/g/o.
        sig = jax.nn.sigmoid(gates)
        th = jnp.tanh(gates)
        return sig[:, 0:D], sig[:, D:2 * D], th[:, 2 * D:3 * D], sig[:, 3 * D:4 * D]

    h1 = jnp.zeros((B, D), jnp.float32)
    c1 = jnp.zeros((B, D), jnp.float32)
    h2 = jnp.zeros((B, D), jnp.float32)
    c2 = jnp.zeros((B, D), jnp.float32)

    ys = []
    # T is tiny and static; a fully-unrolled loop gives the scheduler full
    # visibility to overlap consecutive time steps (live state fits easily in vregs).
    for t in range(T):
        # ---- layer 0: only the recurrent matmul is on the critical path ------
        gates0 = xw[t * B:(t + 1) * B, :] + jnp.dot(
            h1, whh0, preferred_element_type=jnp.float32)
        i0, f0, g0, o0 = split_gates(gates0)
        c1 = f0 * c1 + i0 * g0
        h1 = o0 * jnp.tanh(c1)

        # ---- layer 1: fused [x | h] @ [wih; whh] matmul ----------------------
        # (inter-layer dropout is a no-op in eval mode)
        z = jnp.concatenate([h1, h2], axis=-1)            # (B, 2D)
        gates1 = jnp.dot(z, w1, preferred_element_type=jnp.float32) + b1_b
        i1, f1, g1, o1 = split_gates(gates1)
        c2 = f1 * c2 + i1 * g1
        h2 = o1 * jnp.tanh(c2)

        # ---- LayerNorm over the feature axis ---------------------------------
        mean = jnp.mean(h2, axis=-1, keepdims=True)
        var = jnp.mean((h2 - mean) ** 2, axis=-1, keepdims=True)
        ys.append((h2 - mean) * lax.rsqrt(var + EPS) * gamma_b + beta_b)

    # Single lane-dense (B, T*D) store; the wrapper reshapes to (B, T, D).
    out_ref[...] = jnp.concatenate(ys, axis=-1).astype(out_ref.dtype)


def pack_params(params):
    """Pack all LSTM + LayerNorm parameters into one (rows, 4D) VMEM slab."""
    D = params["gamma"].shape[-1]
    gb = jnp.concatenate(
        [params["gamma"], params["beta"], jnp.zeros((1, 2 * D), jnp.float32)],
        axis=-1)                                          # (1, 4D)
    packed = jnp.concatenate(
        [params["wih0"], params["whh0"],                  # (L, 4D), (D, 4D)
         params["wih1"], params["whh1"],                  # stacked -> (2D, 4D)
         params["b0"], params["b1"], gb], axis=0)
    pad = (-packed.shape[0]) % 8                          # tidy sublane tiling
    if pad:
        packed = jnp.concatenate(
            [packed, jnp.zeros((pad, packed.shape[1]), packed.dtype)], axis=0)
    return packed


def input_projection_forward(x, packed):
    """x: (B, T, l_model) batch-first float32, packed params -> (B, T, d_model)."""
    B, T, L = x.shape
    D = packed.shape[-1] // 4

    # Time-major flatten (layout plumbing, not compute) so the batched input
    # projection indexes contiguous (B, 4D) row blocks per time step in-kernel.
    x2d = jnp.transpose(x, (1, 0, 2)).reshape(T * B, L)

    out = pl.pallas_call(
        _lstm_ln_kernel,
        out_shape=jax.ShapeDtypeStruct((B, T * D), x.dtype),
        grid_spec=pltpu.PrefetchScalarGridSpec(
            num_scalar_prefetch=0,
            grid=(1,),                                    # whole problem fits in VMEM
            in_specs=[
                pl.BlockSpec((T * B, L), lambda i: (0, 0)),      # x (time-major, flat)
                pl.BlockSpec(packed.shape, lambda i: (0, 0)),    # packed params
            ],
            out_specs=pl.BlockSpec((B, T * D), lambda i: (0, 0)),
        ),
        compiler_params=pltpu.CompilerParams(
            dimension_semantics=("arbitrary",)),
    )(x2d, packed)

    return out.reshape(B, T, D)


def reference_forward(x, params):
    """Pure-JAX reference replicating PyTorch LSTM(2 layers) + LayerNorm."""
    B, _, _ = x.shape
    D = params["gamma"].shape[-1]

    def cell(x_in, h, c, wih, whh, b):
        gates = x_in @ wih + h @ whh + b
        i, f, g, o = jnp.split(gates, 4, axis=-1)
        c = jax.nn.sigmoid(f) * c + jax.nn.sigmoid(i) * jnp.tanh(g)
        h = jax.nn.sigmoid(o) * jnp.tanh(c)
        return h, c

    def step(carry, x_t):
        h1, c1, h2, c2 = carry
        h1, c1 = cell(x_t, h1, c1, params["wih0"], params["whh0"], params["b0"])
        h2, c2 = cell(h1, h2, c2, params["wih1"], params["whh1"], params["b1"])
        return (h1, c1, h2, c2), h2

    init = tuple(jnp.zeros((B, D), jnp.float32) for _ in range(4))
    _, hs = lax.scan(step, init, jnp.transpose(x, (1, 0, 2)))
    hs = jnp.transpose(hs, (1, 0, 2))  # (B, T, D)
    mean = jnp.mean(hs, axis=-1, keepdims=True)
    var = jnp.mean((hs - mean) ** 2, axis=-1, keepdims=True)
    return (hs - mean) / jnp.sqrt(var + EPS) * params["gamma"][0] + params["beta"][0]


def init_params(key, l_model, d_model):
    """Deterministic init mirroring PyTorch's U(-1/sqrt(H), 1/sqrt(H)) LSTM init."""
    k = 1.0 / np.sqrt(d_model)
    keys = jax.random.split(key, 10)
    u = lambda kk, shape: jax.random.uniform(kk, shape, jnp.float32, -k, k)
    return {
        # weights stored transposed (in_features, 4*hidden) so the kernel does x @ W
        "wih0": u(keys[0], (l_model, 4 * d_model)),
        "whh0": u(keys[1], (d_model, 4 * d_model)),
        "b0":   u(keys[2], (1, 4 * d_model)) + u(keys[3], (1, 4 * d_model)),  # b_ih + b_hh
        "wih1": u(keys[4], (d_model, 4 * d_model)),
        "whh1": u(keys[5], (d_model, 4 * d_model)),
        "b1":   u(keys[6], (1, 4 * d_model)) + u(keys[7], (1, 4 * d_model)),
        "gamma": jnp.ones((1, d_model), jnp.float32),   # nn.LayerNorm default
        "beta":  jnp.zeros((1, d_model), jnp.float32),
    }


if __name__ == "__main__":
    key = jax.random.PRNGKey(0)
    k_param, k_x = jax.random.split(key)

    B, T = 2, 8
    params = init_params(k_param, L_MODEL, D_MODEL)
    packed = pack_params(params)
    x = jax.random.normal(k_x, (B, T, L_MODEL), jnp.float32)

    out = jax.block_until_ready(input_projection_forward(x, packed))
    ref = jax.block_until_ready(reference_forward(x, params))

    assert out.shape == (B, T, D_MODEL), out.shape
    np.testing.assert_allclose(np.asarray(out), np.asarray(ref), rtol=1e-5, atol=1e-5)

    print("KERNEL_OK")
</pallas_src>

<mosaic_0001>
module attributes {stable_mosaic.version = 11 : i64} {
  func.func @_lstm_ln_kernel(%arg0: i32, %arg1: memref<16x32xf32, #tpu.memory_space<vmem>>, %arg2: memref<136x128xf32, #tpu.memory_space<vmem>>, %arg3: memref<2x256xf32, #tpu.memory_space<vmem>>) attributes {dimension_semantics = [#tpu.dimension_semantics<arbitrary>], iteration_bounds = array<i64: 1>, scalar_prefetch = 0 : i64, scratch_operands = 0 : i64, tpu.core_type = #tpu.core_type<tc>, window_params = [{pipeline_mode = #tpu.pipeline_mode<synchronous>, transform_indices = @transform_0, window_bounds = array<i64: 16, 32>}, {pipeline_mode = #tpu.pipeline_mode<synchronous>, transform_indices = @transform_1, window_bounds = array<i64: 136, 128>}, {pipeline_mode = #tpu.pipeline_mode<synchronous>, transform_indices = @transform_2, window_bounds = array<i64: 2, 256>}]} {
    %c0 = arith.constant 0 : index
    %c0_0 = arith.constant 0 : index
    %0 = vector.load %arg2[%c0, %c0_0] : memref<136x128xf32, #tpu.memory_space<vmem>>, vector<32x128xf32>
    %c32 = arith.constant 32 : index
    %c0_1 = arith.constant 0 : index
    %1 = vector.load %arg2[%c32, %c0_1] : memref<136x128xf32, #tpu.memory_space<vmem>>, vector<32x128xf32>
    %c64 = arith.constant 64 : index
    %c0_2 = arith.constant 0 : index
    %2 = vector.load %arg2[%c64, %c0_2] : memref<136x128xf32, #tpu.memory_space<vmem>>, vector<64x128xf32>
    %c128 = arith.constant 128 : index
    %c0_3 = arith.constant 0 : index
    %3 = vector.load %arg2[%c128, %c0_3] : memref<136x128xf32, #tpu.memory_space<vmem>>, vector<1x128xf32>
    %c129 = arith.constant 129 : index
    %c0_4 = arith.constant 0 : index
    %4 = vector.load %arg2[%c129, %c0_4] : memref<136x128xf32, #tpu.memory_space<vmem>>, vector<1x128xf32>
    %c130 = arith.constant 130 : index
    %c0_5 = arith.constant 0 : index
    %5 = vector.load %arg2[%c130, %c0_5] : memref<136x128xf32, #tpu.memory_space<vmem>>, vector<1x128xf32>
    %6 = vector.shape_cast %4 : vector<1x128xf32> to vector<1x128xf32>
    %7 = vector.broadcast %6 : vector<1x128xf32> to vector<2x128xf32>
    %8 = vector.extract_strided_slice %5 {offsets = [0, 0], sizes = [1, 32], strides = [1, 1]} : vector<1x128xf32> to vector<1x32xf32>
    %9 = vector.shape_cast %8 : vector<1x32xf32> to vector<1x32xf32>
    %10 = vector.broadcast %9 : vector<1x32xf32> to vector<2x32xf32>
    %11 = vector.extract_strided_slice %5 {offsets = [0, 32], sizes = [1, 32], strides = [1, 1]} : vector<1x128xf32> to vector<1x32xf32>
    %12 = vector.shape_cast %11 : vector<1x32xf32> to vector<1x32xf32>
    %13 = vector.broadcast %12 : vector<1x32xf32> to vector<2x32xf32>
    %c0_6 = arith.constant 0 : index
    %c0_7 = arith.constant 0 : index
    %14 = vector.load %arg1[%c0_6, %c0_7] : memref<16x32xf32, #tpu.memory_space<vmem>>, vector<16x32xf32>
    %cst = arith.constant dense<0.000000e+00> : vector<16x128xf32>
    %15 = tpu.matmul %14, %0, %cst {dimension_numbers = #tpu.dot_dimension_numbers<[1], [0], [0], [1], [0, 0, 1, 1], [], []>} : vector<16x32xf32>, vector<32x128xf32>, vector<16x128xf32> -> vector<16x128xf32>
    %16 = vector.shape_cast %3 : vector<1x128xf32> to vector<1x128xf32>
    %17 = vector.broadcast %16 : vector<1x128xf32> to vector<16x128xf32>
    %18 = arith.addf %15, %17 : vector<16x128xf32>
    %cst_8 = arith.constant 0.000000e+00 : f32
    %19 = vector.broadcast %cst_8 : f32 to vector<2x32xf32>
    %cst_9 = arith.constant 0.000000e+00 : f32
    %20 = vector.broadcast %cst_9 : f32 to vector<2x32xf32>
    %cst_10 = arith.constant 0.000000e+00 : f32
    %21 = vector.broadcast %cst_10 : f32 to vector<2x32xf32>
    %cst_11 = arith.constant 0.000000e+00 : f32
    %22 = vector.broadcast %cst_11 : f32 to vector<2x32xf32>
    %23 = vector.extract_strided_slice %18 {offsets = [0, 0], sizes = [2, 128], strides = [1, 1]} : vector<16x128xf32> to vector<2x128xf32>
    %cst_12 = arith.constant dense<0.000000e+00> : vector<2x128xf32>
    %24 = tpu.matmul %19, %1, %cst_12 {dimension_numbers = #tpu.dot_dimension_numbers<[1], [0], [0], [1], [0, 0, 1, 1], [], []>} : vector<2x32xf32>, vector<32x128xf32>, vector<2x128xf32> -> vector<2x128xf32>
    %25 = arith.addf %23, %24 : vector<2x128xf32>
    %26 = arith.negf %25 : vector<2x128xf32>
    %27 = math.exp %26 : vector<2x128xf32>
    %cst_13 = arith.constant 1.000000e+00 : f32
    %28 = vector.broadcast %cst_13 : f32 to vector<2x128xf32>
    %29 = arith.addf %28, %27 : vector<2x128xf32>
    %30 = arith.divf %28, %29 : vector<2x128xf32>
    %31 = math.tanh %25 : vector<2x128xf32>
    %32 = vector.extract_strided_slice %30 {offsets = [0, 0], sizes = [2, 32], strides = [1, 1]} : vector<2x128xf32> to vector<2x32xf32>
    %33 = vector.extract_strided_slice %30 {offsets = [0, 32], sizes = [2, 32], strides = [1, 1]} : vector<2x128xf32> to vector<2x32xf32>
    %34 = vector.extract_strided_slice %31 {offsets = [0, 64], sizes = [2, 32], strides = [1, 1]} : vector<2x128xf32> to vector<2x32xf32>
    %35 = vector.extract_strided_slice %30 {offsets = [0, 96], sizes = [2, 32], strides = [1, 1]} : vector<2x128xf32> to vector<2x32xf32>
    %36 = arith.mulf %33, %20 : vector<2x32xf32>
    %37 = arith.mulf %32, %34 : vector<2x32xf32>
    %38 = arith.addf %36, %37 : vector<2x32xf32>
    %39 = math.tanh %38 : vector<2x32xf32>
    %40 = arith.mulf %35, %39 : vector<2x32xf32>
    %41 = tpu.concatenate %40, %21 in 1 : vector<2x32xf32>, vector<2x32xf32> -> vector<2x64xf32>
    %cst_14 = arith.constant dense<0.000000e+00> : vector<2x128xf32>
    %42 = tpu.matmul %41, %2, %cst_14 {dimension_numbers = #tpu.dot_dimension_numbers<[1], [0], [0], [1], [0, 0, 1, 1], [], []>} : vector<2x64xf32>, vector<64x128xf32>, vector<2x128xf32> -> vector<2x128xf32>
    %43 = arith.addf %42, %7 : vector<2x128xf32>
    %44 = arith.negf %43 : vector<2x128xf32>
    %45 = math.exp %44 : vector<2x128xf32>
    %cst_15 = arith.constant 1.000000e+00 : f32
    %46 = vector.broadcast %cst_15 : f32 to vector<2x128xf32>
    %47 = arith.addf %46, %45 : vector<2x128xf32>
    %48 = arith.divf %46, %47 : vector<2x128xf32>
    %49 = math.tanh %43 : vector<2x128xf32>
    %50 = vector.extract_strided_slice %48 {offsets = [0, 0], sizes = [2, 32], strides = [1, 1]} : vector<2x128xf32> to vector<2x32xf32>
    %51 = vector.extract_strided_slice %48 {offsets = [0, 32], sizes = [2, 32], strides = [1, 1]} : vector<2x128xf32> to vector<2x32xf32>
    %52 = vector.extract_strided_slice %49 {offsets = [0, 64], sizes = [2, 32], strides = [1, 1]} : vector<2x128xf32> to vector<2x32xf32>
    %53 = vector.extract_strided_slice %48 {offsets = [0, 96], sizes = [2, 32], strides = [1, 1]} : vector<2x128xf32> to vector<2x32xf32>
    %54 = arith.mulf %51, %22 : vector<2x32xf32>
    %55 = arith.mulf %50, %52 : vector<2x32xf32>
    %56 = arith.addf %54, %55 : vector<2x32xf32>
    %57 = math.tanh %56 : vector<2x32xf32>
    %58 = arith.mulf %53, %57 : vector<2x32xf32>
    %cst_16 = arith.constant dense<0.000000e+00> : vector<2xf32>
    %59 = vector.multi_reduction <add>, %58, %cst_16 [1] : vector<2x32xf32> to vector<2xf32>
    %60 = vector.shape_cast %59 : vector<2xf32> to vector<2x1xf32>
    %cst_17 = arith.constant 3.200000e+01 : f32
    %61 = vector.broadcast %cst_17 : f32 to vector<2x1xf32>
    %62 = arith.divf %60, %61 : vector<2x1xf32>
    %63 = vector.broadcast %62 : vector<2x1xf32> to vector<2x32xf32>
    %64 = arith.subf %58, %63 : vector<2x32xf32>
    %65 = arith.mulf %64, %64 : vector<2x32xf32>
    %cst_18 = arith.constant dense<0.000000e+00> : vector<2xf32>
    %66 = vector.multi_reduction <add>, %65, %cst_18 [1] : vector<2x32xf32> to vector<2xf32>
    %67 = vector.shape_cast %66 : vector<2xf32> to vector<2x1xf32>
    %cst_19 = arith.constant 3.200000e+01 : f32
    %68 = vector.broadcast %cst_19 : f32 to vector<2x1xf32>
    %69 = arith.divf %67, %68 : vector<2x1xf32>
    %70 = vector.broadcast %62 : vector<2x1xf32> to vector<2x32xf32>
    %71 = arith.subf %58, %70 : vector<2x32xf32>
    %cst_20 = arith.constant 9.99999974E-6 : f32
    %72 = vector.broadcast %cst_20 : f32 to vector<2x1xf32>
    %73 = arith.addf %69, %72 : vector<2x1xf32>
    %74 = math.rsqrt %73 : vector<2x1xf32>
    %75 = vector.broadcast %74 : vector<2x1xf32> to vector<2x32xf32>
    %76 = arith.mulf %71, %75 : vector<2x32xf32>
    %77 = arith.mulf %76, %10 : vector<2x32xf32>
    %78 = arith.addf %77, %13 : vector<2x32xf32>
    %79 = vector.extract_strided_slice %18 {offsets = [2, 0], sizes = [2, 128], strides = [1, 1]} : vector<16x128xf32> to vector<2x128xf32>
    %cst_21 = arith.constant dense<0.000000e+00> : vector<2x128xf32>
    %80 = tpu.matmul %40, %1, %cst_21 {dimension_numbers = #tpu.dot_dimension_numbers<[1], [0], [0], [1], [0, 0, 1, 1], [], []>} : vector<2x32xf32>, vector<32x128xf32>, vector<2x128xf32> -> vector<2x128xf32>
    %81 = arith.addf %79, %80 : vector<2x128xf32>
    %82 = arith.negf %81 : vector<2x128xf32>
    %83 = math.exp %82 : vector<2x128xf32>
    %cst_22 = arith.constant 1.000000e+00 : f32
    %84 = vector.broadcast %cst_22 : f32 to vector<2x128xf32>
    %85 = arith.addf %84, %83 : vector<2x128xf32>
    %86 = arith.divf %84, %85 : vector<2x128xf32>
    %87 = math.tanh %81 : vector<2x128xf32>
    %88 = vector.extract_strided_slice %86 {offsets = [0, 0], sizes = [2, 32], strides = [1, 1]} : vector<2x128xf32> to vector<2x32xf32>
    %89 = vector.extract_strided_slice %86 {offsets = [0, 32], sizes = [2, 32], strides = [1, 1]} : vector<2x128xf32> to vector<2x32xf32>
    %90 = vector.extract_strided_slice %87 {offsets = [0, 64], sizes = [2, 32], strides = [1, 1]} : vector<2x128xf32> to vector<2x32xf32>
    %91 = vector.extract_strided_slice %86 {offsets = [0, 96], sizes = [2, 32], strides = [1, 1]} : vector<2x128xf32> to vector<2x32xf32>
    %92 = arith.mulf %89, %38 : vector<2x32xf32>
    %93 = arith.mulf %88, %90 : vector<2x32xf32>
    %94 = arith.addf %92, %93 : vector<2x32xf32>
    %95 = math.tanh %94 : vector<2x32xf32>
    %96 = arith.mulf %91, %95 : vector<2x32xf32>
    %97 = tpu.concatenate %96, %58 in 1 : vector<2x32xf32>, vector<2x32xf32> -> vector<2x64xf32>
    %cst_23 = arith.constant dense<0.000000e+00> : vector<2x128xf32>
    %98 = tpu.matmul %97, %2, %cst_23 {dimension_numbers = #tpu.dot_dimension_numbers<[1], [0], [0], [1], [0, 0, 1, 1], [], []>} : vector<2x64xf32>, vector<64x128xf32>, vector<2x128xf32> -> vector<2x128xf32>
    %99 = arith.addf %98, %7 : vector<2x128xf32>
    %100 = arith.negf %99 : vector<2x128xf32>
    %101 = math.exp %100 : vector<2x128xf32>
    %cst_24 = arith.constant 1.000000e+00 : f32
    %102 = vector.broadcast %cst_24 : f32 to vector<2x128xf32>
    %103 = arith.addf %102, %101 : vector<2x128xf32>
    %104 = arith.divf %102, %103 : vector<2x128xf32>
    %105 = math.tanh %99 : vector<2x128xf32>
    %106 = vector.extract_strided_slice %104 {offsets = [0, 0], sizes = [2, 32], strides = [1, 1]} : vector<2x128xf32> to vector<2x32xf32>
    %107 = vector.extract_strided_slice %104 {offsets = [0, 32], sizes = [2, 32], strides = [1, 1]} : vector<2x128xf32> to vector<2x32xf32>
    %108 = vector.extract_strided_slice %105 {offsets = [0, 64], sizes = [2, 32], strides = [1, 1]} : vector<2x128xf32> to vector<2x32xf32>
    %109 = vector.extract_strided_slice %104 {offsets = [0, 96], sizes = [2, 32], strides = [1, 1]} : vector<2x128xf32> to vector<2x32xf32>
    %110 = arith.mulf %107, %56 : vector<2x32xf32>
    %111 = arith.mulf %106, %108 : vector<2x32xf32>
    %112 = arith.addf %110, %111 : vector<2x32xf32>
    %113 = math.tanh %112 : vector<2x32xf32>
    %114 = arith.mulf %109, %113 : vector<2x32xf32>
    %cst_25 = arith.constant dense<0.000000e+00> : vector<2xf32>
    %115 = vector.multi_reduction <add>, %114, %cst_25 [1] : vector<2x32xf32> to vector<2xf32>
    %116 = vector.shape_cast %115 : vector<2xf32> to vector<2x1xf32>
    %cst_26 = arith.constant 3.200000e+01 : f32
    %117 = vector.broadcast %cst_26 : f32 to vector<2x1xf32>
    %118 = arith.divf %116, %117 : vector<2x1xf32>
    %119 = vector.broadcast %118 : vector<2x1xf32> to vector<2x32xf32>
    %120 = arith.subf %114, %119 : vector<2x32xf32>
    %121 = arith.mulf %120, %120 : vector<2x32xf32>
    %cst_27 = arith.constant dense<0.000000e+00> : vector<2xf32>
    %122 = vector.multi_reduction <add>, %121, %cst_27 [1] : vector<2x32xf32> to vector<2xf32>
    %123 = vector.shape_cast %122 : vector<2xf32> to vector<2x1xf32>
    %cst_28 = arith.constant 3.200000e+01 : f32
    %124 = vector.broadcast %cst_28 : f32 to vector<2x1xf32>
    %125 = arith.divf %123, %124 : vector<2x1xf32>
    %126 = vector.broadcast %118 : vector<2x1xf32> to vector<2x32xf32>
    %127 = arith.subf %114, %126 : vector<2x32xf32>
    %cst_29 = arith.constant 9.99999974E-6 : f32
    %128 = vector.broadcast %cst_29 : f32 to vector<2x1xf32>
    %129 = arith.addf %125, %128 : vector<2x1xf32>
    %130 = math.rsqrt %129 : vector<2x1xf32>
    %131 = vector.broadcast %130 : vector<2x1xf32> to vector<2x32xf32>
    %132 = arith.mulf %127, %131 : vector<2x32xf32>
    %133 = arith.mulf %132, %10 : vector<2x32xf32>
    %134 = arith.addf %133, %13 : vector<2x32xf32>
    %135 = vector.extract_strided_slice %18 {offsets = [4, 0], sizes = [2, 128], strides = [1, 1]} : vector<16x128xf32> to vector<2x128xf32>
    %cst_30 = arith.constant dense<0.000000e+00> : vector<2x128xf32>
    %136 = tpu.matmul %96, %1, %cst_30 {dimension_numbers = #tpu.dot_dimension_numbers<[1], [0], [0], [1], [0, 0, 1, 1], [], []>} : vector<2x32xf32>, vector<32x128xf32>, vector<2x128xf32> -> vector<2x128xf32>
    %137 = arith.addf %135, %136 : vector<2x128xf32>
    %138 = arith.negf %137 : vector<2x128xf32>
    %139 = math.exp %138 : vector<2x128xf32>
    %cst_31 = arith.constant 1.000000e+00 : f32
    %140 = vector.broadcast %cst_31 : f32 to vector<2x128xf32>
    %141 = arith.addf %140, %139 : vector<2x128xf32>
    %142 = arith.divf %140, %141 : vector<2x128xf32>
    %143 = math.tanh %137 : vector<2x128xf32>
    %144 = vector.extract_strided_slice %142 {offsets = [0, 0], sizes = [2, 32], strides = [1, 1]} : vector<2x128xf32> to vector<2x32xf32>
    %145 = vector.extract_strided_slice %142 {offsets = [0, 32], sizes = [2, 32], strides = [1, 1]} : vector<2x128xf32> to vector<2x32xf32>
    %146 = vector.extract_strided_slice %143 {offsets = [0, 64], sizes = [2, 32], strides = [1, 1]} : vector<2x128xf32> to vector<2x32xf32>
    %147 = vector.extract_strided_slice %142 {offsets = [0, 96], sizes = [2, 32], strides = [1, 1]} : vector<2x128xf32> to vector<2x32xf32>
    %148 = arith.mulf %145, %94 : vector<2x32xf32>
    %149 = arith.mulf %144, %146 : vector<2x32xf32>
    %150 = arith.addf %148, %149 : vector<2x32xf32>
    %151 = math.tanh %150 : vector<2x32xf32>
    %152 = arith.mulf %147, %151 : vector<2x32xf32>
    %153 = tpu.concatenate %152, %114 in 1 : vector<2x32xf32>, vector<2x32xf32> -> vector<2x64xf32>
    %cst_32 = arith.constant dense<0.000000e+00> : vector<2x128xf32>
    %154 = tpu.matmul %153, %2, %cst_32 {dimension_numbers = #tpu.dot_dimension_numbers<[1], [0], [0], [1], [0, 0, 1, 1], [], []>} : vector<2x64xf32>, vector<64x128xf32>, vector<2x128xf32> -> vector<2x128xf32>
    %155 = arith.addf %154, %7 : vector<2x128xf32>
    %156 = arith.negf %155 : vector<2x128xf32>
    %157 = math.exp %156 : vector<2x128xf32>
    %cst_33 = arith.constant 1.000000e+00 : f32
    %158 = vector.broadcast %cst_33 : f32 to vector<2x128xf32>
    %159 = arith.addf %158, %157 : vector<2x128xf32>
    %160 = arith.divf %158, %159 : vector<2x128xf32>
    %161 = math.tanh %155 : vector<2x128xf32>
    %162 = vector.extract_strided_slice %160 {offsets = [0, 0], sizes = [2, 32], strides = [1, 1]} : vector<2x128xf32> to vector<2x32xf32>
    %163 = vector.extract_strided_slice %160 {offsets = [0, 32], sizes = [2, 32], strides = [1, 1]} : vector<2x128xf32> to vector<2x32xf32>
    %164 = vector.extract_strided_slice %161 {offsets = [0, 64], sizes = [2, 32], strides = [1, 1]} : vector<2x128xf32> to vector<2x32xf32>
    %165 = vector.extract_strided_slice %160 {offsets = [0, 96], sizes = [2, 32], strides = [1, 1]} : vector<2x128xf32> to vector<2x32xf32>
    %166 = arith.mulf %163, %112 : vector<2x32xf32>
    %167 = arith.mulf %162, %164 : vector<2x32xf32>
    %168 = arith.addf %166, %167 : vector<2x32xf32>
    %169 = math.tanh %168 : vector<2x32xf32>
    %170 = arith.mulf %165, %169 : vector<2x32xf32>
    %cst_34 = arith.constant dense<0.000000e+00> : vector<2xf32>
    %171 = vector.multi_reduction <add>, %170, %cst_34 [1] : vector<2x32xf32> to vector<2xf32>
    %172 = vector.shape_cast %171 : vector<2xf32> to vector<2x1xf32>
    %cst_35 = arith.constant 3.200000e+01 : f32
    %173 = vector.broadcast %cst_35 : f32 to vector<2x1xf32>
    %174 = arith.divf %172, %173 : vector<2x1xf32>
    %175 = vector.broadcast %174 : vector<2x1xf32> to vector<2x32xf32>
    %176 = arith.subf %170, %175 : vector<2x32xf32>
    %177 = arith.mulf %176, %176 : vector<2x32xf32>
    %cst_36 = arith.constant dense<0.000000e+00> : vector<2xf32>
    %178 = vector.multi_reduction <add>, %177, %cst_36 [1] : vector<2x32xf32> to vector<2xf32>
    %179 = vector.shape_cast %178 : vector<2xf32> to vector<2x1xf32>
    %cst_37 = arith.constant 3.200000e+01 : f32
    %180 = vector.broadcast %cst_37 : f32 to vector<2x1xf32>
    %181 = arith.divf %179, %180 : vector<2x1xf32>
    %182 = vector.broadcast %174 : vector<2x1xf32> to vector<2x32xf32>
    %183 = arith.subf %170, %182 : vector<2x32xf32>
    %cst_38 = arith.constant 9.99999974E-6 : f32
    %184 = vector.broadcast %cst_38 : f32 to vector<2x1xf32>
    %185 = arith.addf %181, %184 : vector<2x1xf32>
    %186 = math.rsqrt %185 : vector<2x1xf32>
    %187 = vector.broadcast %186 : vector<2x1xf32> to vector<2x32xf32>
    %188 = arith.mulf %183, %187 : vector<2x32xf32>
    %189 = arith.mulf %188, %10 : vector<2x32xf32>
    %190 = arith.addf %189, %13 : vector<2x32xf32>
    %191 = vector.extract_strided_slice %18 {offsets = [6, 0], sizes = [2, 128], strides = [1, 1]} : vector<16x128xf32> to vector<2x128xf32>
    %cst_39 = arith.constant dense<0.000000e+00> : vector<2x128xf32>
    %192 = tpu.matmul %152, %1, %cst_39 {dimension_numbers = #tpu.dot_dimension_numbers<[1], [0], [0], [1], [0, 0, 1, 1], [], []>} : vector<2x32xf32>, vector<32x128xf32>, vector<2x128xf32> -> vector<2x128xf32>
    %193 = arith.addf %191, %192 : vector<2x128xf32>
    %194 = arith.negf %193 : vector<2x128xf32>
    %195 = math.exp %194 : vector<2x128xf32>
    %cst_40 = arith.constant 1.000000e+00 : f32
    %196 = vector.broadcast %cst_40 : f32 to vector<2x128xf32>
    %197 = arith.addf %196, %195 : vector<2x128xf32>
    %198 = arith.divf %196, %197 : vector<2x128xf32>
    %199 = math.tanh %193 : vector<2x128xf32>
    %200 = vector.extract_strided_slice %198 {offsets = [0, 0], sizes = [2, 32], strides = [1, 1]} : vector<2x128xf32> to vector<2x32xf32>
    %201 = vector.extract_strided_slice %198 {offsets = [0, 32], sizes = [2, 32], strides = [1, 1]} : vector<2x128xf32> to vector<2x32xf32>
    %202 = vector.extract_strided_slice %199 {offsets = [0, 64], sizes = [2, 32], strides = [1, 1]} : vector<2x128xf32> to vector<2x32xf32>
    %203 = vector.extract_strided_slice %198 {offsets = [0, 96], sizes = [2, 32], strides = [1, 1]} : vector<2x128xf32> to vector<2x32xf32>
    %204 = arith.mulf %201, %150 : vector<2x32xf32>
    %205 = arith.mulf %200, %202 : vector<2x32xf32>
    %206 = arith.addf %204, %205 : vector<2x32xf32>
    %207 = math.tanh %206 : vector<2x32xf32>
    %208 = arith.mulf %203, %207 : vector<2x32xf32>
    %209 = tpu.concatenate %208, %170 in 1 : vector<2x32xf32>, vector<2x32xf32> -> vector<2x64xf32>
    %cst_41 = arith.constant dense<0.000000e+00> : vector<2x128xf32>
    %210 = tpu.matmul %209, %2, %cst_41 {dimension_numbers = #tpu.dot_dimension_numbers<[1], [0], [0], [1], [0, 0, 1, 1], [], []>} : vector<2x64xf32>, vector<64x128xf32>, vector<2x128xf32> -> vector<2x128xf32>
    %211 = arith.addf %210, %7 : vector<2x128xf32>
    %212 = arith.negf %211 : vector<2x128xf32>
    %213 = math.exp %212 : vector<2x128xf32>
    %cst_42 = arith.constant 1.000000e+00 : f32
    %214 = vector.broadcast %cst_42 : f32 to vector<2x128xf32>
    %215 = arith.addf %214, %213 : vector<2x128xf32>
    %216 = arith.divf %214, %215 : vector<2x128xf32>
    %217 = math.tanh %211 : vector<2x128xf32>
    %218 = vector.extract_strided_slice %216 {offsets = [0, 0], sizes = [2, 32], strides = [1, 1]} : vector<2x128xf32> to vector<2x32xf32>
    %219 = vector.extract_strided_slice %216 {offsets = [0, 32], sizes = [2, 32], strides = [1, 1]} : vector<2x128xf32> to vector<2x32xf32>
    %220 = vector.extract_strided_slice %217 {offsets = [0, 64], sizes = [2, 32], strides = [1, 1]} : vector<2x128xf32> to vector<2x32xf32>
    %221 = vector.extract_strided_slice %216 {offsets = [0, 96], sizes = [2, 32], strides = [1, 1]} : vector<2x128xf32> to vector<2x32xf32>
    %222 = arith.mulf %219, %168 : vector<2x32xf32>
    %223 = arith.mulf %218, %220 : vector<2x32xf32>
    %224 = arith.addf %222, %223 : vector<2x32xf32>
    %225 = math.tanh %224 : vector<2x32xf32>
    %226 = arith.mulf %221, %225 : vector<2x32xf32>
    %cst_43 = arith.constant dense<0.000000e+00> : vector<2xf32>
    %227 = vector.multi_reduction <add>, %226, %cst_43 [1] : vector<2x32xf32> to vector<2xf32>
    %228 = vector.shape_cast %227 : vector<2xf32> to vector<2x1xf32>
    %cst_44 = arith.constant 3.200000e+01 : f32
    %229 = vector.broadcast %cst_44 : f32 to vector<2x1xf32>
    %230 = arith.divf %228, %229 : vector<2x1xf32>
    %231 = vector.broadcast %230 : vector<2x1xf32> to vector<2x32xf32>
    %232 = arith.subf %226, %231 : vector<2x32xf32>
    %233 = arith.mulf %232, %232 : vector<2x32xf32>
    %cst_45 = arith.constant dense<0.000000e+00> : vector<2xf32>
    %234 = vector.multi_reduction <add>, %233, %cst_45 [1] : vector<2x32xf32> to vector<2xf32>
    %235 = vector.shape_cast %234 : vector<2xf32> to vector<2x1xf32>
    %cst_46 = arith.constant 3.200000e+01 : f32
    %236 = vector.broadcast %cst_46 : f32 to vector<2x1xf32>
    %237 = arith.divf %235, %236 : vector<2x1xf32>
    %238 = vector.broadcast %230 : vector<2x1xf32> to vector<2x32xf32>
    %239 = arith.subf %226, %238 : vector<2x32xf32>
    %cst_47 = arith.constant 9.99999974E-6 : f32
    %240 = vector.broadcast %cst_47 : f32 to vector<2x1xf32>
    %241 = arith.addf %237, %240 : vector<2x1xf32>
    %242 = math.rsqrt %241 : vector<2x1xf32>
    %243 = vector.broadcast %242 : vector<2x1xf32> to vector<2x32xf32>
    %244 = arith.mulf %239, %243 : vector<2x32xf32>
    %245 = arith.mulf %244, %10 : vector<2x32xf32>
    %246 = arith.addf %245, %13 : vector<2x32xf32>
    %247 = vector.extract_strided_slice %18 {offsets = [8, 0], sizes = [2, 128], strides = [1, 1]} : vector<16x128xf32> to vector<2x128xf32>
    %cst_48 = arith.constant dense<0.000000e+00> : vector<2x128xf32>
    %248 = tpu.matmul %208, %1, %cst_48 {dimension_numbers = #tpu.dot_dimension_numbers<[1], [0], [0], [1], [0, 0, 1, 1], [], []>} : vector<2x32xf32>, vector<32x128xf32>, vector<2x128xf32> -> vector<2x128xf32>
    %249 = arith.addf %247, %248 : vector<2x128xf32>
    %250 = arith.negf %249 : vector<2x128xf32>
    %251 = math.exp %250 : vector<2x128xf32>
    %cst_49 = arith.constant 1.000000e+00 : f32
    %252 = vector.broadcast %cst_49 : f32 to vector<2x128xf32>
    %253 = arith.addf %252, %251 : vector<2x128xf32>
    %254 = arith.divf %252, %253 : vector<2x128xf32>
    %255 = math.tanh %249 : vector<2x128xf32>
    %256 = vector.extract_strided_slice %254 {offsets = [0, 0], sizes = [2, 32], strides = [1, 1]} : vector<2x128xf32> to vector<2x32xf32>
    %257 = vector.extract_strided_slice %254 {offsets = [0, 32], sizes = [2, 32], strides = [1, 1]} : vector<2x128xf32> to vector<2x32xf32>
    %258 = vector.extract_strided_slice %255 {offsets = [0, 64], sizes = [2, 32], strides = [1, 1]} : vector<2x128xf32> to vector<2x32xf32>
    %259 = vector.extract_strided_slice %254 {offsets = [0, 96], sizes = [2, 32], strides = [1, 1]} : vector<2x128xf32> to vector<2x32xf32>
    %260 = arith.mulf %257, %206 : vector<2x32xf32>
    %261 = arith.mulf %256, %258 : vector<2x32xf32>
    %262 = arith.addf %260, %261 : vector<2x32xf32>
    %263 = math.tanh %262 : vector<2x32xf32>
    %264 = arith.mulf %259, %263 : vector<2x32xf32>
    %265 = tpu.concatenate %264, %226 in 1 : vector<2x32xf32>, vector<2x32xf32> -> vector<2x64xf32>
    %cst_50 = arith.constant dense<0.000000e+00> : vector<2x128xf32>
    %266 = tpu.matmul %265, %2, %cst_50 {dimension_numbers = #tpu.dot_dimension_numbers<[1], [0], [0], [1], [0, 0, 1, 1], [], []>} : vector<2x64xf32>, vector<64x128xf32>, vector<2x128xf32> -> vector<2x128xf32>
    %267 = arith.addf %266, %7 : vector<2x128xf32>
    %268 = arith.negf %267 : vector<2x128xf32>
    %269 = math.exp %268 : vector<2x128xf32>
    %cst_51 = arith.constant 1.000000e+00 : f32
    %270 = vector.broadcast %cst_51 : f32 to vector<2x128xf32>
    %271 = arith.addf %270, %269 : vector<2x128xf32>
    %272 = arith.divf %270, %271 : vector<2x128xf32>
    %273 = math.tanh %267 : vector<2x128xf32>
    %274 = vector.extract_strided_slice %272 {offsets = [0, 0], sizes = [2, 32], strides = [1, 1]} : vector<2x128xf32> to vector<2x32xf32>
    %275 = vector.extract_strided_slice %272 {offsets = [0, 32], sizes = [2, 32], strides = [1, 1]} : vector<2x128xf32> to vector<2x32xf32>
    %276 = vector.extract_strided_slice %273 {offsets = [0, 64], sizes = [2, 32], strides = [1, 1]} : vector<2x128xf32> to vector<2x32xf32>
    %277 = vector.extract_strided_slice %272 {offsets = [0, 96], sizes = [2, 32], strides = [1, 1]} : vector<2x128xf32> to vector<2x32xf32>
    %278 = arith.mulf %275, %224 : vector<2x32xf32>
    %279 = arith.mulf %274, %276 : vector<2x32xf32>
    %280 = arith.addf %278, %279 : vector<2x32xf32>
    %281 = math.tanh %280 : vector<2x32xf32>
    %282 = arith.mulf %277, %281 : vector<2x32xf32>
    %cst_52 = arith.constant dense<0.000000e+00> : vector<2xf32>
    %283 = vector.multi_reduction <add>, %282, %cst_52 [1] : vector<2x32xf32> to vector<2xf32>
    %284 = vector.shape_cast %283 : vector<2xf32> to vector<2x1xf32>
    %cst_53 = arith.constant 3.200000e+01 : f32
    %285 = vector.broadcast %cst_53 : f32 to vector<2x1xf32>
    %286 = arith.divf %284, %285 : vector<2x1xf32>
    %287 = vector.broadcast %286 : vector<2x1xf32> to vector<2x32xf32>
    %288 = arith.subf %282, %287 : vector<2x32xf32>
    %289 = arith.mulf %288, %288 : vector<2x32xf32>
    %cst_54 = arith.constant dense<0.000000e+00> : vector<2xf32>
    %290 = vector.multi_reduction <add>, %289, %cst_54 [1] : vector<2x32xf32> to vector<2xf32>
    %291 = vector.shape_cast %290 : vector<2xf32> to vector<2x1xf32>
    %cst_55 = arith.constant 3.200000e+01 : f32
    %292 = vector.broadcast %cst_55 : f32 to vector<2x1xf32>
    %293 = arith.divf %291, %292 : vector<2x1xf32>
    %294 = vector.broadcast %286 : vector<2x1xf32> to vector<2x32xf32>
    %295 = arith.subf %282, %294 : vector<2x32xf32>
    %cst_56 = arith.constant 9.99999974E-6 : f32
    %296 = vector.broadcast %cst_56 : f32 to vector<2x1xf32>
    %297 = arith.addf %293, %296 : vector<2x1xf32>
    %298 = math.rsqrt %297 : vector<2x1xf32>
    %299 = vector.broadcast %298 : vector<2x1xf32> to vector<2x32xf32>
    %300 = arith.mulf %295, %299 : vector<2x32xf32>
    %301 = arith.mulf %300, %10 : vector<2x32xf32>
    %302 = arith.addf %301, %13 : vector<2x32xf32>
    %303 = vector.extract_strided_slice %18 {offsets = [10, 0], sizes = [2, 128], strides = [1, 1]} : vector<16x128xf32> to vector<2x128xf32>
    %cst_57 = arith.constant dense<0.000000e+00> : vector<2x128xf32>
    %304 = tpu.matmul %264, %1, %cst_57 {dimension_numbers = #tpu.dot_dimension_numbers<[1], [0], [0], [1], [0, 0, 1, 1], [], []>} : vector<2x32xf32>, vector<32x128xf32>, vector<2x128xf32> -> vector<2x128xf32>
    %305 = arith.addf %303, %304 : vector<2x128xf32>
    %306 = arith.negf %305 : vector<2x128xf32>
    %307 = math.exp %306 : vector<2x128xf32>
    %cst_58 = arith.constant 1.000000e+00 : f32
    %308 = vector.broadcast %cst_58 : f32 to vector<2x128xf32>
    %309 = arith.addf %308, %307 : vector<2x128xf32>
    %310 = arith.divf %308, %309 : vector<2x128xf32>
    %311 = math.tanh %305 : vector<2x128xf32>
    %312 = vector.extract_strided_slice %310 {offsets = [0, 0], sizes = [2, 32], strides = [1, 1]} : vector<2x128xf32> to vector<2x32xf32>
    %313 = vector.extract_strided_slice %310 {offsets = [0, 32], sizes = [2, 32], strides = [1, 1]} : vector<2x128xf32> to vector<2x32xf32>
    %314 = vector.extract_strided_slice %311 {offsets = [0, 64], sizes = [2, 32], strides = [1, 1]} : vector<2x128xf32> to vector<2x32xf32>
    %315 = vector.extract_strided_slice %310 {offsets = [0, 96], sizes = [2, 32], strides = [1, 1]} : vector<2x128xf32> to vector<2x32xf32>
    %316 = arith.mulf %313, %262 : vector<2x32xf32>
    %317 = arith.mulf %312, %314 : vector<2x32xf32>
    %318 = arith.addf %316, %317 : vector<2x32xf32>
    %319 = math.tanh %318 : vector<2x32xf32>
    %320 = arith.mulf %315, %319 : vector<2x32xf32>
    %321 = tpu.concatenate %320, %282 in 1 : vector<2x32xf32>, vector<2x32xf32> -> vector<2x64xf32>
    %cst_59 = arith.constant dense<0.000000e+00> : vector<2x128xf32>
    %322 = tpu.matmul %321, %2, %cst_59 {dimension_numbers = #tpu.dot_dimension_numbers<[1], [0], [0], [1], [0, 0, 1, 1], [], []>} : vector<2x64xf32>, vector<64x128xf32>, vector<2x128xf32> -> vector<2x128xf32>
    %323 = arith.addf %322, %7 : vector<2x128xf32>
    %324 = arith.negf %323 : vector<2x128xf32>
    %325 = math.exp %324 : vector<2x128xf32>
    %cst_60 = arith.constant 1.000000e+00 : f32
    %326 = vector.broadcast %cst_60 : f32 to vector<2x128xf32>
    %327 = arith.addf %326, %325 : vector<2x128xf32>
    %328 = arith.divf %326, %327 : vector<2x128xf32>
    %329 = math.tanh %323 : vector<2x128xf32>
    %330 = vector.extract_strided_slice %328 {offsets = [0, 0], sizes = [2, 32], strides = [1, 1]} : vector<2x128xf32> to vector<2x32xf32>
    %331 = vector.extract_strided_slice %328 {offsets = [0, 32], sizes = [2, 32], strides = [1, 1]} : vector<2x128xf32> to vector<2x32xf32>
    %332 = vector.extract_strided_slice %329 {offsets = [0, 64], sizes = [2, 32], strides = [1, 1]} : vector<2x128xf32> to vector<2x32xf32>
    %333 = vector.extract_strided_slice %328 {offsets = [0, 96], sizes = [2, 32], strides = [1, 1]} : vector<2x128xf32> to vector<2x32xf32>
    %334 = arith.mulf %331, %280 : vector<2x32xf32>
    %335 = arith.mulf %330, %332 : vector<2x32xf32>
    %336 = arith.addf %334, %335 : vector<2x32xf32>
    %337 = math.tanh %336 : vector<2x32xf32>
    %338 = arith.mulf %333, %337 : vector<2x32xf32>
    %cst_61 = arith.constant dense<0.000000e+00> : vector<2xf32>
    %339 = vector.multi_reduction <add>, %338, %cst_61 [1] : vector<2x32xf32> to vector<2xf32>
    %340 = vector.shape_cast %339 : vector<2xf32> to vector<2x1xf32>
    %cst_62 = arith.constant 3.200000e+01 : f32
    %341 = vector.broadcast %cst_62 : f32 to vector<2x1xf32>
    %342 = arith.divf %340, %341 : vector<2x1xf32>
    %343 = vector.broadcast %342 : vector<2x1xf32> to vector<2x32xf32>
    %344 = arith.subf %338, %343 : vector<2x32xf32>
    %345 = arith.mulf %344, %344 : vector<2x32xf32>
    %cst_63 = arith.constant dense<0.000000e+00> : vector<2xf32>
    %346 = vector.multi_reduction <add>, %345, %cst_63 [1] : vector<2x32xf32> to vector<2xf32>
    %347 = vector.shape_cast %346 : vector<2xf32> to vector<2x1xf32>
    %cst_64 = arith.constant 3.200000e+01 : f32
    %348 = vector.broadcast %cst_64 : f32 to vector<2x1xf32>
    %349 = arith.divf %347, %348 : vector<2x1xf32>
    %350 = vector.broadcast %342 : vector<2x1xf32> to vector<2x32xf32>
    %351 = arith.subf %338, %350 : vector<2x32xf32>
    %cst_65 = arith.constant 9.99999974E-6 : f32
    %352 = vector.broadcast %cst_65 : f32 to vector<2x1xf32>
    %353 = arith.addf %349, %352 : vector<2x1xf32>
    %354 = math.rsqrt %353 : vector<2x1xf32>
    %355 = vector.broadcast %354 : vector<2x1xf32> to vector<2x32xf32>
    %356 = arith.mulf %351, %355 : vector<2x32xf32>
    %357 = arith.mulf %356, %10 : vector<2x32xf32>
    %358 = arith.addf %357, %13 : vector<2x32xf32>
    %359 = vector.extract_strided_slice %18 {offsets = [12, 0], sizes = [2, 128], strides = [1, 1]} : vector<16x128xf32> to vector<2x128xf32>
    %cst_66 = arith.constant dense<0.000000e+00> : vector<2x128xf32>
    %360 = tpu.matmul %320, %1, %cst_66 {dimension_numbers = #tpu.dot_dimension_numbers<[1], [0], [0], [1], [0, 0, 1, 1], [], []>} : vector<2x32xf32>, vector<32x128xf32>, vector<2x128xf32> -> vector<2x128xf32>
    %361 = arith.addf %359, %360 : vector<2x128xf32>
    %362 = arith.negf %361 : vector<2x128xf32>
    %363 = math.exp %362 : vector<2x128xf32>
    %cst_67 = arith.constant 1.000000e+00 : f32
    %364 = vector.broadcast %cst_67 : f32 to vector<2x128xf32>
    %365 = arith.addf %364, %363 : vector<2x128xf32>
    %366 = arith.divf %364, %365 : vector<2x128xf32>
    %367 = math.tanh %361 : vector<2x128xf32>
    %368 = vector.extract_strided_slice %366 {offsets = [0, 0], sizes = [2, 32], strides = [1, 1]} : vector<2x128xf32> to vector<2x32xf32>
    %369 = vector.extract_strided_slice %366 {offsets = [0, 32], sizes = [2, 32], strides = [1, 1]} : vector<2x128xf32> to vector<2x32xf32>
    %370 = vector.extract_strided_slice %367 {offsets = [0, 64], sizes = [2, 32], strides = [1, 1]} : vector<2x128xf32> to vector<2x32xf32>
    %371 = vector.extract_strided_slice %366 {offsets = [0, 96], sizes = [2, 32], strides = [1, 1]} : vector<2x128xf32> to vector<2x32xf32>
    %372 = arith.mulf %369, %318 : vector<2x32xf32>
    %373 = arith.mulf %368, %370 : vector<2x32xf32>
    %374 = arith.addf %372, %373 : vector<2x32xf32>
    %375 = math.tanh %374 : vector<2x32xf32>
    %376 = arith.mulf %371, %375 : vector<2x32xf32>
    %377 = tpu.concatenate %376, %338 in 1 : vector<2x32xf32>, vector<2x32xf32> -> vector<2x64xf32>
    %cst_68 = arith.constant dense<0.000000e+00> : vector<2x128xf32>
    %378 = tpu.matmul %377, %2, %cst_68 {dimension_numbers = #tpu.dot_dimension_numbers<[1], [0], [0], [1], [0, 0, 1, 1], [], []>} : vector<2x64xf32>, vector<64x128xf32>, vector<2x128xf32> -> vector<2x128xf32>
    %379 = arith.addf %378, %7 : vector<2x128xf32>
    %380 = arith.negf %379 : vector<2x128xf32>
    %381 = math.exp %380 : vector<2x128xf32>
    %cst_69 = arith.constant 1.000000e+00 : f32
    %382 = vector.broadcast %cst_69 : f32 to vector<2x128xf32>
    %383 = arith.addf %382, %381 : vector<2x128xf32>
    %384 = arith.divf %382, %383 : vector<2x128xf32>
    %385 = math.tanh %379 : vector<2x128xf32>
    %386 = vector.extract_strided_slice %384 {offsets = [0, 0], sizes = [2, 32], strides = [1, 1]} : vector<2x128xf32> to vector<2x32xf32>
    %387 = vector.extract_strided_slice %384 {offsets = [0, 32], sizes = [2, 32], strides = [1, 1]} : vector<2x128xf32> to vector<2x32xf32>
    %388 = vector.extract_strided_slice %385 {offsets = [0, 64], sizes = [2, 32], strides = [1, 1]} : vector<2x128xf32> to vector<2x32xf32>
    %389 = vector.extract_strided_slice %384 {offsets = [0, 96], sizes = [2, 32], strides = [1, 1]} : vector<2x128xf32> to vector<2x32xf32>
    %390 = arith.mulf %387, %336 : vector<2x32xf32>
    %391 = arith.mulf %386, %388 : vector<2x32xf32>
    %392 = arith.addf %390, %391 : vector<2x32xf32>
    %393 = math.tanh %392 : vector<2x32xf32>
    %394 = arith.mulf %389, %393 : vector<2x32xf32>
    %cst_70 = arith.constant dense<0.000000e+00> : vector<2xf32>
    %395 = vector.multi_reduction <add>, %394, %cst_70 [1] : vector<2x32xf32> to vector<2xf32>
    %396 = vector.shape_cast %395 : vector<2xf32> to vector<2x1xf32>
    %cst_71 = arith.constant 3.200000e+01 : f32
    %397 = vector.broadcast %cst_71 : f32 to vector<2x1xf32>
    %398 = arith.divf %396, %397 : vector<2x1xf32>
    %399 = vector.broadcast %398 : vector<2x1xf32> to vector<2x32xf32>
    %400 = arith.subf %394, %399 : vector<2x32xf32>
    %401 = arith.mulf %400, %400 : vector<2x32xf32>
    %cst_72 = arith.constant dense<0.000000e+00> : vector<2xf32>
    %402 = vector.multi_reduction <add>, %401, %cst_72 [1] : vector<2x32xf32> to vector<2xf32>
    %403 = vector.shape_cast %402 : vector<2xf32> to vector<2x1xf32>
    %cst_73 = arith.constant 3.200000e+01 : f32
    %404 = vector.broadcast %cst_73 : f32 to vector<2x1xf32>
    %405 = arith.divf %403, %404 : vector<2x1xf32>
    %406 = vector.broadcast %398 : vector<2x1xf32> to vector<2x32xf32>
    %407 = arith.subf %394, %406 : vector<2x32xf32>
    %cst_74 = arith.constant 9.99999974E-6 : f32
    %408 = vector.broadcast %cst_74 : f32 to vector<2x1xf32>
    %409 = arith.addf %405, %408 : vector<2x1xf32>
    %410 = math.rsqrt %409 : vector<2x1xf32>
    %411 = vector.broadcast %410 : vector<2x1xf32> to vector<2x32xf32>
    %412 = arith.mulf %407, %411 : vector<2x32xf32>
    %413 = arith.mulf %412, %10 : vector<2x32xf32>
    %414 = arith.addf %413, %13 : vector<2x32xf32>
    %415 = vector.extract_strided_slice %18 {offsets = [14, 0], sizes = [2, 128], strides = [1, 1]} : vector<16x128xf32> to vector<2x128xf32>
    %cst_75 = arith.constant dense<0.000000e+00> : vector<2x128xf32>
    %416 = tpu.matmul %376, %1, %cst_75 {dimension_numbers = #tpu.dot_dimension_numbers<[1], [0], [0], [1], [0, 0, 1, 1], [], []>} : vector<2x32xf32>, vector<32x128xf32>, vector<2x128xf32> -> vector<2x128xf32>
    %417 = arith.addf %415, %416 : vector<2x128xf32>
    %418 = arith.negf %417 : vector<2x128xf32>
    %419 = math.exp %418 : vector<2x128xf32>
    %cst_76 = arith.constant 1.000000e+00 : f32
    %420 = vector.broadcast %cst_76 : f32 to vector<2x128xf32>
    %421 = arith.addf %420, %419 : vector<2x128xf32>
    %422 = arith.divf %420, %421 : vector<2x128xf32>
    %423 = math.tanh %417 : vector<2x128xf32>
    %424 = vector.extract_strided_slice %422 {offsets = [0, 0], sizes = [2, 32], strides = [1, 1]} : vector<2x128xf32> to vector<2x32xf32>
    %425 = vector.extract_strided_slice %422 {offsets = [0, 32], sizes = [2, 32], strides = [1, 1]} : vector<2x128xf32> to vector<2x32xf32>
    %426 = vector.extract_strided_slice %423 {offsets = [0, 64], sizes = [2, 32], strides = [1, 1]} : vector<2x128xf32> to vector<2x32xf32>
    %427 = vector.extract_strided_slice %422 {offsets = [0, 96], sizes = [2, 32], strides = [1, 1]} : vector<2x128xf32> to vector<2x32xf32>
    %428 = arith.mulf %425, %374 : vector<2x32xf32>
    %429 = arith.mulf %424, %426 : vector<2x32xf32>
    %430 = arith.addf %428, %429 : vector<2x32xf32>
    %431 = math.tanh %430 : vector<2x32xf32>
    %432 = arith.mulf %427, %431 : vector<2x32xf32>
    %433 = tpu.concatenate %432, %394 in 1 : vector<2x32xf32>, vector<2x32xf32> -> vector<2x64xf32>
    %cst_77 = arith.constant dense<0.000000e+00> : vector<2x128xf32>
    %434 = tpu.matmul %433, %2, %cst_77 {dimension_numbers = #tpu.dot_dimension_numbers<[1], [0], [0], [1], [0, 0, 1, 1], [], []>} : vector<2x64xf32>, vector<64x128xf32>, vector<2x128xf32> -> vector<2x128xf32>
    %435 = arith.addf %434, %7 : vector<2x128xf32>
    %436 = arith.negf %435 : vector<2x128xf32>
    %437 = math.exp %436 : vector<2x128xf32>
    %cst_78 = arith.constant 1.000000e+00 : f32
    %438 = vector.broadcast %cst_78 : f32 to vector<2x128xf32>
    %439 = arith.addf %438, %437 : vector<2x128xf32>
    %440 = arith.divf %438, %439 : vector<2x128xf32>
    %441 = math.tanh %435 : vector<2x128xf32>
    %442 = vector.extract_strided_slice %440 {offsets = [0, 0], sizes = [2, 32], strides = [1, 1]} : vector<2x128xf32> to vector<2x32xf32>
    %443 = vector.extract_strided_slice %440 {offsets = [0, 32], sizes = [2, 32], strides = [1, 1]} : vector<2x128xf32> to vector<2x32xf32>
    %444 = vector.extract_strided_slice %441 {offsets = [0, 64], sizes = [2, 32], strides = [1, 1]} : vector<2x128xf32> to vector<2x32xf32>
    %445 = vector.extract_strided_slice %440 {offsets = [0, 96], sizes = [2, 32], strides = [1, 1]} : vector<2x128xf32> to vector<2x32xf32>
    %446 = arith.mulf %443, %392 : vector<2x32xf32>
    %447 = arith.mulf %442, %444 : vector<2x32xf32>
    %448 = arith.addf %446, %447 : vector<2x32xf32>
    %449 = math.tanh %448 : vector<2x32xf32>
    %450 = arith.mulf %445, %449 : vector<2x32xf32>
    %cst_79 = arith.constant dense<0.000000e+00> : vector<2xf32>
    %451 = vector.multi_reduction <add>, %450, %cst_79 [1] : vector<2x32xf32> to vector<2xf32>
    %452 = vector.shape_cast %451 : vector<2xf32> to vector<2x1xf32>
    %cst_80 = arith.constant 3.200000e+01 : f32
    %453 = vector.broadcast %cst_80 : f32 to vector<2x1xf32>
    %454 = arith.divf %452, %453 : vector<2x1xf32>
    %455 = vector.broadcast %454 : vector<2x1xf32> to vector<2x32xf32>
    %456 = arith.subf %450, %455 : vector<2x32xf32>
    %457 = arith.mulf %456, %456 : vector<2x32xf32>
    %cst_81 = arith.constant dense<0.000000e+00> : vector<2xf32>
    %458 = vector.multi_reduction <add>, %457, %cst_81 [1] : vector<2x32xf32> to vector<2xf32>
    %459 = vector.shape_cast %458 : vector<2xf32> to vector<2x1xf32>
    %cst_82 = arith.constant 3.200000e+01 : f32
    %460 = vector.broadcast %cst_82 : f32 to vector<2x1xf32>
    %461 = arith.divf %459, %460 : vector<2x1xf32>
    %462 = vector.broadcast %454 : vector<2x1xf32> to vector<2x32xf32>
    %463 = arith.subf %450, %462 : vector<2x32xf32>
    %cst_83 = arith.constant 9.99999974E-6 : f32
    %464 = vector.broadcast %cst_83 : f32 to vector<2x1xf32>
    %465 = arith.addf %461, %464 : vector<2x1xf32>
    %466 = math.rsqrt %465 : vector<2x1xf32>
    %467 = vector.broadcast %466 : vector<2x1xf32> to vector<2x32xf32>
    %468 = arith.mulf %463, %467 : vector<2x32xf32>
    %469 = arith.mulf %468, %10 : vector<2x32xf32>
    %470 = arith.addf %469, %13 : vector<2x32xf32>
    %471 = tpu.concatenate %78, %134, %190, %246, %302, %358, %414, %470 in 1 : vector<2x32xf32>, vector<2x32xf32>, vector<2x32xf32>, vector<2x32xf32>, vector<2x32xf32>, vector<2x32xf32>, vector<2x32xf32>, vector<2x32xf32> -> vector<2x256xf32>
    %c0_84 = arith.constant 0 : index
    %c0_85 = arith.constant 0 : index
    %472 = vector.load %arg3[%c0_84, %c0_85] : memref<2x256xf32, #tpu.memory_space<vmem>>, vector<2x256xf32>
    tpu.vector_store %arg3[%c0_84, %c0_85], %471 {strides = array<i32>} : memref<2x256xf32, #tpu.memory_space<vmem>>, vector<2x256xf32>,
    return
  }
  func.func @transform_0(%arg0: i32) -> (i32, i32) {
    %c0_i32 = arith.constant 0 : i32
    %c0_i32_0 = arith.constant 0 : i32
    %c0_i32_1 = arith.constant 0 : i32
    return %c0_i32, %c0_i32_0 : i32, i32
  }
  func.func @transform_1(%arg0: i32) -> (i32, i32) {
    %c0_i32 = arith.constant 0 : i32
    %c0_i32_0 = arith.constant 0 : i32
    %c0_i32_1 = arith.constant 0 : i32
    return %c0_i32, %c0_i32_0 : i32, i32
  }
  func.func @transform_2(%arg0: i32) -> (i32, i32) {
    %c0_i32 = arith.constant 0 : i32
    %c0_i32_0 = arith.constant 0 : i32
    %c0_i32_1 = arith.constant 0 : i32
    return %c0_i32, %c0_i32_0 : i32, i32
  }
}

</mosaic_0001>

<llo_original>
// kernel: tpu_custom_call.1
$region0: #{tpu_custom_call.1}
  #allocation0 [shape = 'u32[]', space=smem, size = 0x4, offset = 0x4, fixed_abs, tag = 'smem constant byte address 0x4 - core index']
  #allocation1 [shape = 'u32[72,128]{1,0:T(1,128)}', space=vmem, size = 0x9000, scoped, tag = 'internal scratch']
  %s0 = inlined_call_operand.hbm [shape: f32[16,32], index: 0, kind: input, shape index: {}]
  %s1 = inlined_call_operand.hbm [shape: f32[136,128], index: 1, kind: input, shape index: {}]
  %s2 = inlined_call_operand.hbm [shape: f32[2,256], index: 2, kind: output, shape index: {}]
  %s3 = sld [smem:[#allocation0]]
  $region26: #{tpu_custom_call.1} parent=0
    _
  %s5 = ssub.s32 1, %s3
  %s6 = scalar_select 0, %s5, %s3
  $region1: #{tpu_custom_call.1} parent=0
    #allocation2 [shape = 'u8[8192]{0}', space=vmem, size = 0x2000, scoped, tag = 'input window, operand 0, single buffered']
    #allocation3 [shape = 's32[1]{0}', space=sflag, size = 0x4, scoped, tag = 'scoped memory for tpu_custom_call.1']
    #allocation4 [shape = 's32[1]{0}', space=sflag, size = 0x4, scoped, tag = 'scoped memory for tpu_custom_call.1']
    #allocation5 [shape = 'u8[69632]{0}', space=vmem, size = 0x11000, scoped, tag = 'input window, operand 1, single buffered']
    #allocation6 [shape = 's32[1]{0}', space=sflag, size = 0x4, scoped, tag = 'scoped memory for tpu_custom_call.1']
    #allocation7 [shape = 'u8[2048]{0}', space=vmem, size = 0x800, scoped, tag = 'output window, operand 0, single buffered']
    %7 = vsyncpa [#allocation3], 0
    %8 = vsyncpa [#allocation6], 0
    %9 = vsyncpa [#allocation4], 0
    // Predicated region
    $region2: #{tpu_custom_call.1} parent=1 // pred_check
      _
    $region3: #{tpu_custom_call.1} parent=1 // pred_check_branch
      %11 = sbr.rel (0) target = $region5
    $region4: #{tpu_custom_call.1} parent=1 // pred_region
      %13 = vsyncadd [#allocation3], 0
      %s14 = sshll.u32 %s0, 4
      %s15 = int_to_ptr.hbm [resolvable:$true] %s14
      %s16 = sshll.u32 [#allocation2], 4
      %s17 = int_to_ptr.vmem [resolvable:$true] %s16
      %22 = dma.hbm_to_vmem [thread:$0]  %s15, 256, %s17, [#allocation3], 128, 128, 8
    $region5: #{tpu_custom_call.1} parent=1 // pred_fallthru
      _
    // Predicated region
    $region6: #{tpu_custom_call.1} parent=1 // pred_check
      _
    $region7: #{tpu_custom_call.1} parent=1 // pred_check_branch
      %24 = sbr.rel (0) target = $region9
    $region8: #{tpu_custom_call.1} parent=1 // pred_region
      %26 = vsyncadd [#allocation6], 0
      %s27 = sshll.u32 %s1, 4
      %s28 = int_to_ptr.hbm [resolvable:$true] %s27
      %s29 = sshll.u32 [#allocation5], 4
      %s30 = int_to_ptr.vmem [resolvable:$true] %s29
      %35 = dma.hbm_to_vmem [thread:$0]  %s28, 2176, %s30, [#allocation6], 128, 128, 8
    $region9: #{tpu_custom_call.1} parent=1 // pred_fallthru
      _
    // Predicated region
    $region10: #{tpu_custom_call.1} parent=1 // pred_check
      _
    $region11: #{tpu_custom_call.1} parent=1 // pred_check_branch
      %37 = sbr.rel (0) target = $region13
    $region12: #{tpu_custom_call.1} parent=1 // pred_region
      %39 = dma.done [#allocation3], 256
    $region13: #{tpu_custom_call.1} parent=1 // pred_fallthru
      _
    // Predicated region
    $region14: #{tpu_custom_call.1} parent=1 // pred_check
      _
    $region15: #{tpu_custom_call.1} parent=1 // pred_check_branch
      %41 = sbr.rel (0) target = $region17
    $region16: #{tpu_custom_call.1} parent=1 // pred_region
      %43 = dma.done [#allocation6], 2176
    $region17: #{tpu_custom_call.1} parent=1 // pred_fallthru
      _
    %v44 = vld [vmem:[#allocation5] sm:$0xff]
    %v45 = vld [vmem:[#allocation5 + $0x8] sm:$0xff]
    %v46 = vld [vmem:[#allocation5 + $0x10] sm:$0xff]
    %v47 = vld [vmem:[#allocation5 + $0x18] sm:$0xff]
    %v48 = vld [vmem:[#allocation5 + $0x20] sm:$0xff]
    %v49 = vld [vmem:[#allocation5 + $0x28] sm:$0xff]
    %v50 = vld [vmem:[#allocation5 + $0x30] sm:$0xff]
    %v51 = vld [vmem:[#allocation5 + $0x38] sm:$0xff]
    %v52 = vld [vmem:[#allocation5 + $0x40] sm:$0xff]
    %v53 = vld [vmem:[#allocation5 + $0x48] sm:$0xff]
    %v54 = vld [vmem:[#allocation5 + $0x50] sm:$0xff]
    %v55 = vld [vmem:[#allocation5 + $0x58] sm:$0xff]
    %v56 = vld [vmem:[#allocation5 + $0x60] sm:$0xff]
    %v57 = vld [vmem:[#allocation5 + $0x68] sm:$0xff]
    %v58 = vld [vmem:[#allocation5 + $0x70] sm:$0xff]
    %v59 = vld [vmem:[#allocation5 + $0x78] sm:$0xff]
    %v60 = vld [vmem:[#allocation5 + $0x80] sm:$0x1]
    %v61 = vld [vmem:[#allocation5 + $0x81] sm:$0x1]
    %v62 = vld [vmem:[#allocation5 + $0x82] sm:$0x1]
    %v63 = vperm.slane %v61, 0
    %v64 = vperm.slane %v62, 0
    %v65 = vld [vmem:[#allocation2] sm:$0xff]
    %v66 = vld [vmem:[#allocation2 + $0x8] sm:$0xff]
    %v67 = vperm.slane %v60, 0
    %vm68 = vcmask 261120
    %v70 = vsel %vm68, %v65, 0
    %v73 = vsel %vm68, %v66, 0
    %75 = vmatpush.msra.mxu0 0.0
    %76 = vmatpush.msra.mxu0 0.0
    %77 = vmatpush.msra.mxu0 0.0
    %78 = vmatpush.msra.mxu0 0.0
    %79 = vmatpush.msra.mxu0 0.0
    %80 = vmatpush.msra.mxu0 0.0
    %81 = vmatpush.msra.mxu0 0.0
    %82 = vmatpush.msra.mxu0 0.0
    %83 = vmatpush.msra.mxu0 0.0
    %84 = vmatpush.msra.mxu0 0.0
    %85 = vmatpush.msra.mxu0 0.0
    %86 = vmatpush.msra.mxu0 0.0
    %87 = vmatpush.msra.mxu0 %v47
    %88 = vmatpush.msra.mxu0 %v46
    %89 = vmatpush.msra.mxu0 %v45
    %90 = vmatpush.msra.mxu0 %v44
    %91 = vmatmul.f32.gmra.mxu0 %v70
    %v92 = vpop.f32.mrf.mxu0
    %v93 = vadd.f32 %v67, %v92
    %94 = vmatmul.f32.gmra.mxu0 %v73
    %v95 = vpop.f32.mrf.mxu0
    %v96 = vadd.f32 %v67, %v95
    %97 = vdwg.mxu0
    %v99 = vsel %vm68, 0.0, 0
    %101 = vmatpush.msra.mxu0 0.0
    %102 = vmatpush.msra.mxu0 0.0
    %103 = vmatpush.msra.mxu0 0.0
    %104 = vmatpush.msra.mxu0 0.0
    %105 = vmatpush.msra.mxu0 0.0
    %106 = vmatpush.msra.mxu0 0.0
    %107 = vmatpush.msra.mxu0 0.0
    %108 = vmatpush.msra.mxu0 0.0
    %109 = vmatpush.msra.mxu0 0.0
    %110 = vmatpush.msra.mxu0 0.0
    %111 = vmatpush.msra.mxu0 0.0
    %112 = vmatpush.msra.mxu0 0.0
    %113 = vmatpush.msra.mxu0 %v51
    %114 = vmatpush.msra.mxu0 %v50
    %115 = vmatpush.msra.mxu0 %v49
    %116 = vmatpush.msra.mxu0 %v48
    %117 = vmatmul.f32.gmra.mxu0 %v99
    %v118 = vpop.f32.mrf.mxu0
    %v119 = vadd.f32 0.0, %v118
    %120 = vdwg.mxu0
    %v121 = vadd.f32 %v93, %v119
    %v122 = vxor.u32 %v121, 2147483648
    %v123 = vmul.f32 %v122, 1.442695
    %v124 = vpow.pop %v123
    %v125 = vadd.f32 %v124, 1.0
    %v126 = vrcp.pop %v125
    %v127 = vmul.f32 %v125, %v126
    %v128 = vsub.f32 1.0, %v127
    %v129 = vmul.f32 %v126, %v128
    %v130 = vadd.f32 %v126, %v129
    %vm131 = vweird.f32 %v125
    %vm132 = vweird.f32 %v126
    %vm133 = vmor %vm131, %vm132
    %v134 = vsel %vm133, %v126, %v130
    %v135 = vand.u32 2147483647, %v125
    %vm136 = vcmp.eq.f32.partialorder %v135, 8.507059e+37
    %v137 = vand.u32 %v125, 2147483648
    %v138 = vor.u32 1.1754944e-38, %v137
    %v139 = vsel %vm136, %v138, %v134
    %v140 = vmul.f32 1.0, %v139
    %v141 = vtanh.pop %v121
    %v142 = vmul.f32 %v140, 0.0
    %144 = vrot.lane.b32.xlu0 %v141, 64
    %v145 = vpop.permute.xlu0 %144
    %v147 = vmul.f32 %v140, %v145
    %149 = vrot.lane.b32.xlu0 %v147, 32
    %v150 = vpop.permute.xlu0 %149
    %v152 = vadd.f32 %v142, %v150
    %v153 = vtanh.pop %v152
    %155 = vrot.lane.b32.xlu0 %v153, 64
    %v156 = vpop.permute.xlu0 %155
    %v158 = vmul.f32 %v140, %v156
    %160 = vrot.lane.b32.xlu0 %v158, 32
    %v161 = vpop.permute.xlu0 %160
    %v163 = vsel %vm68, %v161, 0.0
    %vm164 = vcmask 523264
    %v166 = vsel %vm164, %v163, 0
    %168 = vmatpush.msra.mxu0 0.0
    %169 = vmatpush.msra.mxu0 0.0
    %170 = vmatpush.msra.mxu0 0.0
    %171 = vmatpush.msra.mxu0 0.0
    %172 = vmatpush.msra.mxu0 0.0
    %173 = vmatpush.msra.mxu0 0.0
    %174 = vmatpush.msra.mxu0 0.0
    %175 = vmatpush.msra.mxu0 0.0
    %176 = vmatpush.msra.mxu0 %v59
    %177 = vmatpush.msra.mxu0 %v58
    %178 = vmatpush.msra.mxu0 %v57
    %179 = vmatpush.msra.mxu0 %v56
    %180 = vmatpush.msra.mxu0 %v55
    %181 = vmatpush.msra.mxu0 %v54
    %182 = vmatpush.msra.mxu0 %v53
    %183 = vmatpush.msra.mxu0 %v52
    %184 = vmatmul.f32.gmra.mxu0 %v166
    %v185 = vpop.f32.mrf.mxu0
    %v186 = vadd.f32 %v63, %v185
    %187 = vdwg.mxu0
    %v188 = vxor.u32 %v186, 2147483648
    %v189 = vmul.f32 %v188, 1.442695
    %v190 = vpow.pop %v189
    %v191 = vadd.f32 %v190, 1.0
    %v192 = vrcp.pop %v191
    %v193 = vmul.f32 %v191, %v192
    %v194 = vsub.f32 1.0, %v193
    %v195 = vmul.f32 %v192, %v194
    %v196 = vadd.f32 %v192, %v195
    %vm197 = vweird.f32 %v191
    %vm198 = vweird.f32 %v192
    %vm199 = vmor %vm197, %vm198
    %v200 = vsel %vm199, %v192, %v196
    %v201 = vand.u32 2147483647, %v191
    %vm202 = vcmp.eq.f32.partialorder %v201, 8.507059e+37
    %v203 = vand.u32 %v191, 2147483648
    %v204 = vor.u32 1.1754944e-38, %v203
    %v205 = vsel %vm202, %v204, %v200
    %v206 = vmul.f32 1.0, %v205
    %v207 = vtanh.pop %v186
    %v208 = vmul.f32 %v206, 0.0
    %210 = vrot.lane.b32.xlu0 %v207, 64
    %v211 = vpop.permute.xlu0 %210
    %v213 = vmul.f32 %v206, %v211
    %215 = vrot.lane.b32.xlu0 %v213, 32
    %v216 = vpop.permute.xlu0 %215
    %v218 = vadd.f32 %v208, %v216
    %v219 = vtanh.pop %v218
    %221 = vrot.lane.b32.xlu0 %v219, 64
    %v222 = vpop.permute.xlu0 %221
    %v224 = vmul.f32 %v206, %v222
    %226 = vrot.lane.b32.xlu0 %v224, 32
    %v227 = vpop.permute.xlu0 %226
    %vm229 = vcmask 254976
    %v230 = vsel %vm229, %v227, 0.0
    %231 = vadd.xlane.f32.xlu0 %v230
    %v232 = vpop.xlane.xlu0 %231
    %v233 = vrcp.pop 32.0
    %v234 = vmul.f32 32.0, %v233
    %v235 = vsub.f32 1.0, %v234
    %v236 = vmul.f32 %v233, %v235
    %v237 = vadd.f32 %v233, %v236
    %vm238 = vweird.f32 %v233
    %v239 = vsel %vm238, %v233, %v237
    %v240 = vmul.f32 %v232, %v239
    %v241 = vsub.f32 %v224, %v240
    %v242 = vmul.f32 %v241, %v241
    %244 = vrot.lane.b32.xlu0 %v242, 32
    %v245 = vpop.permute.xlu0 %244
    %v247 = vsel %vm229, %v245, 0.0
    %248 = vadd.xlane.f32.xlu0 %v247
    %v249 = vpop.xlane.xlu0 %248
    %v250 = vmul.f32 %v249, %v239
    %v251 = vadd.f32 %v250, 1e-05
    %v252 = vrsqrt.pop %v251
    %v253 = vmul.f32 %v252, %v251
    %v254 = vmul.f32 %v253, %v252
    %v255 = vmul.f32 0.5, %v254
    %v256 = vsub.f32 1.5, %v255
    %v257 = vmul.f32 %v252, %v256
    %vm258 = vweird.f32 %v251
    %vm259 = vweird.f32 %v252
    %vm260 = vmor %vm258, %vm259
    %v261 = vsel %vm260, %v252, %v257
    %v262 = vmul.f32 %v241, %v261
    %264 = vrot.lane.b32.xlu0 %v64, 96
    %v265 = vpop.permute.xlu0 %264
    %v267 = vmul.f32 %v262, %v265
    %268 = vrot.lane.b32.xlu0 %v64, 64
    %v269 = vpop.permute.xlu0 %268
    %v271 = vadd.f32 %v267, %v269
    %v272 = vsel %vm68, %v161, 0
    %274 = vmatpush.msra.mxu0 0.0
    %275 = vmatpush.msra.mxu0 0.0
    %276 = vmatpush.msra.mxu0 0.0
    %277 = vmatpush.msra.mxu0 0.0
    %278 = vmatpush.msra.mxu0 0.0
    %279 = vmatpush.msra.mxu0 0.0
    %280 = vmatpush.msra.mxu0 0.0
    %281 = vmatpush.msra.mxu0 0.0
    %282 = vmatpush.msra.mxu0 0.0
    %283 = vmatpush.msra.mxu0 0.0
    %284 = vmatpush.msra.mxu0 0.0
    %285 = vmatpush.msra.mxu0 0.0
    %286 = vmatpush.msra.mxu0 %v51
    %287 = vmatpush.msra.mxu0 %v50
    %288 = vmatpush.msra.mxu0 %v49
    %289 = vmatpush.msra.mxu0 %v48
    %290 = vmatmul.f32.gmra.mxu0 %v272
    %v291 = vpop.f32.mrf.mxu0
    %v292 = vadd.f32 0.0, %v291
    %293 = vdwg.mxu0
    %v295 = vrot.slane %v292, 6
    %v297 = vadd.f32 %v93, %v295
    %v298 = vxor.u32 %v297, 2147483648
    %v299 = vmul.f32 %v298, 1.442695
    %v300 = vpow.pop %v299
    %v301 = vadd.f32 %v300, 1.0
    %v302 = vrcp.pop %v301
    %v303 = vmul.f32 %v301, %v302
    %v304 = vsub.f32 1.0, %v303
    %v305 = vmul.f32 %v302, %v304
    %v306 = vadd.f32 %v302, %v305
    %vm307 = vweird.f32 %v301
    %vm308 = vweird.f32 %v302
    %vm309 = vmor %vm307, %vm308
    %v310 = vsel %vm309, %v302, %v306
    %v311 = vand.u32 2147483647, %v301
    %vm312 = vcmp.eq.f32.partialorder %v311, 8.507059e+37
    %v313 = vand.u32 %v301, 2147483648
    %v314 = vor.u32 1.1754944e-38, %v313
    %v315 = vsel %vm312, %v314, %v310
    %v316 = vmul.f32 1.0, %v315
    %v317 = vtanh.pop %v297
    %v319 = vrot.slane %v152, 6
    %v321 = vmul.f32 %v316, %v319
    %323 = vrot.lane.b32.xlu0 %v317, 64
    %v324 = vpop.permute.xlu0 %323
    %v326 = vmul.f32 %v316, %v324
    %328 = vrot.lane.b32.xlu0 %v326, 32
    %v329 = vpop.permute.xlu0 %328
    %v331 = vadd.f32 %v321, %v329
    %v332 = vtanh.pop %v331
    %334 = vrot.lane.b32.xlu0 %v332, 64
    %v335 = vpop.permute.xlu0 %334
    %v337 = vmul.f32 %v316, %v335
    %339 = vrot.lane.b32.xlu0 %v337, 32
    %v340 = vpop.permute.xlu0 %339
    %v342 = vrot.slane %v224, 6
    %343 = vrot.lane.b32.xlu0 %v342, 64
    %v344 = vpop.permute.xlu0 %343
    %v346 = vsel %vm68, %v340, %v344
    %v348 = vrot.slane %v346, 2
    %v349 = vsel %vm164, %v348, 0
    %351 = vmatpush.msra.mxu0 0.0
    %352 = vmatpush.msra.mxu0 0.0
    %353 = vmatpush.msra.mxu0 0.0
    %354 = vmatpush.msra.mxu0 0.0
    %355 = vmatpush.msra.mxu0 0.0
    %356 = vmatpush.msra.mxu0 0.0
    %357 = vmatpush.msra.mxu0 0.0
    %358 = vmatpush.msra.mxu0 0.0
    %359 = vmatpush.msra.mxu0 %v59
    %360 = vmatpush.msra.mxu0 %v58
    %361 = vmatpush.msra.mxu0 %v57
    %362 = vmatpush.msra.mxu0 %v56
    %363 = vmatpush.msra.mxu0 %v55
    %364 = vmatpush.msra.mxu0 %v54
    %365 = vmatpush.msra.mxu0 %v53
    %366 = vmatpush.msra.mxu0 %v52
    %367 = vmatmul.f32.gmra.mxu0 %v349
    %v368 = vpop.f32.mrf.mxu0
    %v369 = vadd.f32 %v63, %v368
    %370 = vdwg.mxu0
    %v371 = vxor.u32 %v369, 2147483648
    %v372 = vmul.f32 %v371, 1.442695
    %v373 = vpow.pop %v372
    %v374 = vadd.f32 %v373, 1.0
    %v375 = vrcp.pop %v374
    %v376 = vmul.f32 %v374, %v375
    %v377 = vsub.f32 1.0, %v376
    %v378 = vmul.f32 %v375, %v377
    %v379 = vadd.f32 %v375, %v378
    %vm380 = vweird.f32 %v374
    %vm381 = vweird.f32 %v375
    %vm382 = vmor %vm380, %vm381
    %v383 = vsel %vm382, %v375, %v379
    %v384 = vand.u32 2147483647, %v374
    %vm385 = vcmp.eq.f32.partialorder %v384, 8.507059e+37
    %v386 = vand.u32 %v374, 2147483648
    %v387 = vor.u32 1.1754944e-38, %v386
    %v388 = vsel %vm385, %v387, %v383
    %v389 = vmul.f32 1.0, %v388
    %v390 = vtanh.pop %v369
    %v391 = vmul.f32 %v389, %v218
    %393 = vrot.lane.b32.xlu0 %v390, 64
    %v394 = vpop.permute.xlu0 %393
    %v396 = vmul.f32 %v389, %v394
    %398 = vrot.lane.b32.xlu0 %v396, 32
    %v399 = vpop.permute.xlu0 %398
    %v401 = vadd.f32 %v391, %v399
    %v402 = vtanh.pop %v401
    %404 = vrot.lane.b32.xlu0 %v402, 64
    %v405 = vpop.permute.xlu0 %404
    %v407 = vmul.f32 %v389, %v405
    %409 = vrot.lane.b32.xlu0 %v407, 32
    %v410 = vpop.permute.xlu0 %409
    %v412 = vsel %vm229, %v410, 0.0
    %413 = vadd.xlane.f32.xlu0 %v412
    %v414 = vpop.xlane.xlu0 %413
    %v415 = vmul.f32 %v414, %v239
    %v416 = vsub.f32 %v407, %v415
    %v417 = vmul.f32 %v416, %v416
    %419 = vrot.lane.b32.xlu0 %v417, 32
    %v420 = vpop.permute.xlu0 %419
    %v422 = vsel %vm229, %v420, 0.0
    %423 = vadd.xlane.f32.xlu0 %v422
    %v424 = vpop.xlane.xlu0 %423
    %v425 = vmul.f32 %v424, %v239
    %v426 = vadd.f32 %v425, 1e-05
    %v427 = vrsqrt.pop %v426
    %v428 = vmul.f32 %v427, %v426
    %v429 = vmul.f32 %v428, %v427
    %v430 = vmul.f32 0.5, %v429
    %v431 = vsub.f32 1.5, %v430
    %v432 = vmul.f32 %v427, %v431
    %vm433 = vweird.f32 %v426
    %vm434 = vweird.f32 %v427
    %vm435 = vmor %vm433, %vm434
    %v436 = vsel %vm435, %v427, %v432
    %v437 = vmul.f32 %v416, %v436
    %v438 = vmul.f32 %v437, %v265
    %v439 = vadd.f32 %v438, %v269
    %v440 = vrot.slane %v337, 2
    %441 = vrot.lane.b32.xlu0 %v440, 32
    %v442 = vpop.permute.xlu0 %441
    %v443 = vsel %vm68, %v442, 0
    %445 = vmatpush.msra.mxu0 0.0
    %446 = vmatpush.msra.mxu0 0.0
    %447 = vmatpush.msra.mxu0 0.0
    %448 = vmatpush.msra.mxu0 0.0
    %449 = vmatpush.msra.mxu0 0.0
    %450 = vmatpush.msra.mxu0 0.0
    %451 = vmatpush.msra.mxu0 0.0
    %452 = vmatpush.msra.mxu0 0.0
    %453 = vmatpush.msra.mxu0 0.0
    %454 = vmatpush.msra.mxu0 0.0
    %455 = vmatpush.msra.mxu0 0.0
    %456 = vmatpush.msra.mxu0 0.0
    %457 = vmatpush.msra.mxu0 %v51
    %458 = vmatpush.msra.mxu0 %v50
    %459 = vmatpush.msra.mxu0 %v49
    %460 = vmatpush.msra.mxu0 %v48
    %461 = vmatmul.f32.gmra.mxu0 %v443
    %v462 = vpop.f32.mrf.mxu0
    %v463 = vadd.f32 0.0, %v462
    %464 = vdwg.mxu0
    %v466 = vrot.slane %v463, 4
    %v468 = vadd.f32 %v93, %v466
    %v469 = vxor.u32 %v468, 2147483648
    %v470 = vmul.f32 %v469, 1.442695
    %v471 = vpow.pop %v470
    %v472 = vadd.f32 %v471, 1.0
    %v473 = vrcp.pop %v472
    %v474 = vmul.f32 %v472, %v473
    %v475 = vsub.f32 1.0, %v474
    %v476 = vmul.f32 %v473, %v475
    %v477 = vadd.f32 %v473, %v476
    %vm478 = vweird.f32 %v472
    %vm479 = vweird.f32 %v473
    %vm480 = vmor %vm478, %vm479
    %v481 = vsel %vm480, %v473, %v477
    %v482 = vand.u32 2147483647, %v472
    %vm483 = vcmp.eq.f32.partialorder %v482, 8.507059e+37
    %v484 = vand.u32 %v472, 2147483648
    %v485 = vor.u32 1.1754944e-38, %v484
    %v486 = vsel %vm483, %v485, %v481
    %v487 = vmul.f32 1.0, %v486
    %v488 = vtanh.pop %v468
    %v490 = vrot.slane %v331, 6
    %v492 = vmul.f32 %v487, %v490
    %494 = vrot.lane.b32.xlu0 %v488, 64
    %v495 = vpop.permute.xlu0 %494
    %v497 = vmul.f32 %v487, %v495
    %499 = vrot.lane.b32.xlu0 %v497, 32
    %v500 = vpop.permute.xlu0 %499
    %v502 = vadd.f32 %v492, %v500
    %v503 = vtanh.pop %v502
    %505 = vrot.lane.b32.xlu0 %v503, 64
    %v506 = vpop.permute.xlu0 %505
    %v508 = vmul.f32 %v487, %v506
    %510 = vrot.lane.b32.xlu0 %v508, 32
    %v511 = vpop.permute.xlu0 %510
    %v513 = vrot.slane %v407, 4
    %514 = vrot.lane.b32.xlu0 %v513, 64
    %v515 = vpop.permute.xlu0 %514
    %v517 = vsel %vm68, %v511, %v515
    %v519 = vrot.slane %v517, 4
    %v520 = vsel %vm164, %v519, 0
    %522 = vmatpush.msra.mxu0 0.0
    %523 = vmatpush.msra.mxu0 0.0
    %524 = vmatpush.msra.mxu0 0.0
    %525 = vmatpush.msra.mxu0 0.0
    %526 = vmatpush.msra.mxu0 0.0
    %527 = vmatpush.msra.mxu0 0.0
    %528 = vmatpush.msra.mxu0 0.0
    %529 = vmatpush.msra.mxu0 0.0
    %530 = vmatpush.msra.mxu0 %v59
    %531 = vmatpush.msra.mxu0 %v58
    %532 = vmatpush.msra.mxu0 %v57
    %533 = vmatpush.msra.mxu0 %v56
    %534 = vmatpush.msra.mxu0 %v55
    %535 = vmatpush.msra.mxu0 %v54
    %536 = vmatpush.msra.mxu0 %v53
    %537 = vmatpush.msra.mxu0 %v52
    %538 = vmatmul.f32.gmra.mxu0 %v520
    %v539 = vpop.f32.mrf.mxu0
    %v540 = vadd.f32 %v63, %v539
    %541 = vdwg.mxu0
    %v542 = vxor.u32 %v540, 2147483648
    %v543 = vmul.f32 %v542, 1.442695
    %v544 = vpow.pop %v543
    %v545 = vadd.f32 %v544, 1.0
    %v546 = vrcp.pop %v545
    %v547 = vmul.f32 %v545, %v546
    %v548 = vsub.f32 1.0, %v547
    %v549 = vmul.f32 %v546, %v548
    %v550 = vadd.f32 %v546, %v549
    %vm551 = vweird.f32 %v545
    %vm552 = vweird.f32 %v546
    %vm553 = vmor %vm551, %vm552
    %v554 = vsel %vm553, %v546, %v550
    %v555 = vand.u32 2147483647, %v545
    %vm556 = vcmp.eq.f32.partialorder %v555, 8.507059e+37
    %v557 = vand.u32 %v545, 2147483648
    %v558 = vor.u32 1.1754944e-38, %v557
    %v559 = vsel %vm556, %v558, %v554
    %v560 = vmul.f32 1.0, %v559
    %v561 = vtanh.pop %v540
    %v562 = vmul.f32 %v560, %v401
    %564 = vrot.lane.b32.xlu0 %v561, 64
    %v565 = vpop.permute.xlu0 %564
    %v567 = vmul.f32 %v560, %v565
    %569 = vrot.lane.b32.xlu0 %v567, 32
    %v570 = vpop.permute.xlu0 %569
    %v572 = vadd.f32 %v562, %v570
    %v573 = vtanh.pop %v572
    %575 = vrot.lane.b32.xlu0 %v573, 64
    %v576 = vpop.permute.xlu0 %575
    %v578 = vmul.f32 %v560, %v576
    %580 = vrot.lane.b32.xlu0 %v578, 32
    %v581 = vpop.permute.xlu0 %580
    %v583 = vsel %vm229, %v581, 0.0
    %584 = vadd.xlane.f32.xlu0 %v583
    %v585 = vpop.xlane.xlu0 %584
    %v586 = vmul.f32 %v585, %v239
    %v587 = vsub.f32 %v578, %v586
    %v588 = vmul.f32 %v587, %v587
    %590 = vrot.lane.b32.xlu0 %v588, 32
    %v591 = vpop.permute.xlu0 %590
    %v593 = vsel %vm229, %v591, 0.0
    %594 = vadd.xlane.f32.xlu0 %v593
    %v595 = vpop.xlane.xlu0 %594
    %v596 = vmul.f32 %v595, %v239
    %v597 = vadd.f32 %v596, 1e-05
    %v598 = vrsqrt.pop %v597
    %v599 = vmul.f32 %v598, %v597
    %v600 = vmul.f32 %v599, %v598
    %v601 = vmul.f32 0.5, %v600
    %v602 = vsub.f32 1.5, %v601
    %v603 = vmul.f32 %v598, %v602
    %vm604 = vweird.f32 %v597
    %vm605 = vweird.f32 %v598
    %vm606 = vmor %vm604, %vm605
    %v607 = vsel %vm606, %v598, %v603
    %v608 = vmul.f32 %v587, %v607
    %v609 = vmul.f32 %v608, %v265
    %v610 = vadd.f32 %v609, %v269
    %v611 = vrot.slane %v508, 4
    %612 = vrot.lane.b32.xlu0 %v611, 32
    %v613 = vpop.permute.xlu0 %612
    %v614 = vsel %vm68, %v613, 0
    %616 = vmatpush.msra.mxu0 0.0
    %617 = vmatpush.msra.mxu0 0.0
    %618 = vmatpush.msra.mxu0 0.0
    %619 = vmatpush.msra.mxu0 0.0
    %620 = vmatpush.msra.mxu0 0.0
    %621 = vmatpush.msra.mxu0 0.0
    %622 = vmatpush.msra.mxu0 0.0
    %623 = vmatpush.msra.mxu0 0.0
    %624 = vmatpush.msra.mxu0 0.0
    %625 = vmatpush.msra.mxu0 0.0
    %626 = vmatpush.msra.mxu0 0.0
    %627 = vmatpush.msra.mxu0 0.0
    %628 = vmatpush.msra.mxu0 %v51
    %629 = vmatpush.msra.mxu0 %v50
    %630 = vmatpush.msra.mxu0 %v49
    %631 = vmatpush.msra.mxu0 %v48
    %632 = vmatmul.f32.gmra.mxu0 %v614
    %v633 = vpop.f32.mrf.mxu0
    %v634 = vadd.f32 0.0, %v633
    %635 = vdwg.mxu0
    %v637 = vrot.slane %v634, 2
    %v639 = vadd.f32 %v93, %v637
    %v640 = vxor.u32 %v639, 2147483648
    %v641 = vmul.f32 %v640, 1.442695
    %v642 = vpow.pop %v641
    %v643 = vadd.f32 %v642, 1.0
    %v644 = vrcp.pop %v643
    %v645 = vmul.f32 %v643, %v644
    %v646 = vsub.f32 1.0, %v645
    %v647 = vmul.f32 %v644, %v646
    %v648 = vadd.f32 %v644, %v647
    %vm649 = vweird.f32 %v643
    %vm650 = vweird.f32 %v644
    %vm651 = vmor %vm649, %vm650
    %v652 = vsel %vm651, %v644, %v648
    %v653 = vand.u32 2147483647, %v643
    %vm654 = vcmp.eq.f32.partialorder %v653, 8.507059e+37
    %v655 = vand.u32 %v643, 2147483648
    %v656 = vor.u32 1.1754944e-38, %v655
    %v657 = vsel %vm654, %v656, %v652
    %v658 = vmul.f32 1.0, %v657
    %v659 = vtanh.pop %v639
    %v661 = vrot.slane %v502, 6
    %v663 = vmul.f32 %v658, %v661
    %665 = vrot.lane.b32.xlu0 %v659, 64
    %v666 = vpop.permute.xlu0 %665
    %v668 = vmul.f32 %v658, %v666
    %670 = vrot.lane.b32.xlu0 %v668, 32
    %v671 = vpop.permute.xlu0 %670
    %v673 = vadd.f32 %v663, %v671
    %v674 = vtanh.pop %v673
    %676 = vrot.lane.b32.xlu0 %v674, 64
    %v677 = vpop.permute.xlu0 %676
    %v679 = vmul.f32 %v658, %v677
    %681 = vrot.lane.b32.xlu0 %v679, 32
    %v682 = vpop.permute.xlu0 %681
    %v684 = vrot.slane %v578, 2
    %685 = vrot.lane.b32.xlu0 %v684, 64
    %v686 = vpop.permute.xlu0 %685
    %v688 = vsel %vm68, %v682, %v686
    %v690 = vrot.slane %v688, 6
    %v691 = vsel %vm164, %v690, 0
    %693 = vmatpush.msra.mxu0 0.0
    %694 = vmatpush.msra.mxu0 0.0
    %695 = vmatpush.msra.mxu0 0.0
    %696 = vmatpush.msra.mxu0 0.0
    %697 = vmatpush.msra.mxu0 0.0
    %698 = vmatpush.msra.mxu0 0.0
    %699 = vmatpush.msra.mxu0 0.0
    %700 = vmatpush.msra.mxu0 0.0
    %701 = vmatpush.msra.mxu0 %v59
    %702 = vmatpush.msra.mxu0 %v58
    %703 = vmatpush.msra.mxu0 %v57
    %704 = vmatpush.msra.mxu0 %v56
    %705 = vmatpush.msra.mxu0 %v55
    %706 = vmatpush.msra.mxu0 %v54
    %707 = vmatpush.msra.mxu0 %v53
    %708 = vmatpush.msra.mxu0 %v52
    %709 = vmatmul.f32.gmra.mxu0 %v691
    %v710 = vpop.f32.mrf.mxu0
    %v711 = vadd.f32 %v63, %v710
    %712 = vdwg.mxu0
    %v713 = vxor.u32 %v711, 2147483648
    %v714 = vmul.f32 %v713, 1.442695
    %v715 = vpow.pop %v714
    %v716 = vadd.f32 %v715, 1.0
    %v717 = vrcp.pop %v716
    %v718 = vmul.f32 %v716, %v717
    %v719 = vsub.f32 1.0, %v718
    %v720 = vmul.f32 %v717, %v719
    %v721 = vadd.f32 %v717, %v720
    %vm722 = vweird.f32 %v716
    %vm723 = vweird.f32 %v717
    %vm724 = vmor %vm722, %vm723
    %v725 = vsel %vm724, %v717, %v721
    %v726 = vand.u32 2147483647, %v716
    %vm727 = vcmp.eq.f32.partialorder %v726, 8.507059e+37
    %v728 = vand.u32 %v716, 2147483648
    %v729 = vor.u32 1.1754944e-38, %v728
    %v730 = vsel %vm727, %v729, %v725
    %v731 = vmul.f32 1.0, %v730
    %v732 = vtanh.pop %v711
    %v733 = vmul.f32 %v731, %v572
    %735 = vrot.lane.b32.xlu0 %v732, 64
    %v736 = vpop.permute.xlu0 %735
    %v738 = vmul.f32 %v731, %v736
    %740 = vrot.lane.b32.xlu0 %v738, 32
    %v741 = vpop.permute.xlu0 %740
    %v743 = vadd.f32 %v733, %v741
    %v744 = vtanh.pop %v743
    %746 = vrot.lane.b32.xlu0 %v744, 64
    %v747 = vpop.permute.xlu0 %746
    %v749 = vmul.f32 %v731, %v747
    %751 = vrot.lane.b32.xlu0 %v749, 32
    %v752 = vpop.permute.xlu0 %751
    %v754 = vsel %vm229, %v752, 0.0
    %755 = vadd.xlane.f32.xlu0 %v754
    %v756 = vpop.xlane.xlu0 %755
    %v757 = vmul.f32 %v756, %v239
    %v758 = vsub.f32 %v749, %v757
    %v759 = vmul.f32 %v758, %v758
    %761 = vrot.lane.b32.xlu0 %v759, 32
    %v762 = vpop.permute.xlu0 %761
    %v764 = vsel %vm229, %v762, 0.0
    %765 = vadd.xlane.f32.xlu0 %v764
    %v766 = vpop.xlane.xlu0 %765
    %v767 = vmul.f32 %v766, %v239
    %v768 = vadd.f32 %v767, 1e-05
    %v769 = vrsqrt.pop %v768
    %v770 = vmul.f32 %v769, %v768
    %v771 = vmul.f32 %v770, %v769
    %v772 = vmul.f32 0.5, %v771
    %v773 = vsub.f32 1.5, %v772
    %v774 = vmul.f32 %v769, %v773
    %vm775 = vweird.f32 %v768
    %vm776 = vweird.f32 %v769
    %vm777 = vmor %vm775, %vm776
    %v778 = vsel %vm777, %v769, %v774
    %v779 = vmul.f32 %v758, %v778
    %v780 = vmul.f32 %v779, %v265
    %v781 = vadd.f32 %v780, %v269
    %v782 = vrot.slane %v679, 6
    %783 = vrot.lane.b32.xlu0 %v782, 32
    %v784 = vpop.permute.xlu0 %783
    %v785 = vsel %vm68, %v784, 0
    %787 = vmatpush.msra.mxu0 0.0
    %788 = vmatpush.msra.mxu0 0.0
    %789 = vmatpush.msra.mxu0 0.0
    %790 = vmatpush.msra.mxu0 0.0
    %791 = vmatpush.msra.mxu0 0.0
    %792 = vmatpush.msra.mxu0 0.0
    %793 = vmatpush.msra.mxu0 0.0
    %794 = vmatpush.msra.mxu0 0.0
    %795 = vmatpush.msra.mxu0 0.0
    %796 = vmatpush.msra.mxu0 0.0
    %797 = vmatpush.msra.mxu0 0.0
    %798 = vmatpush.msra.mxu0 0.0
    %799 = vmatpush.msra.mxu0 %v51
    %800 = vmatpush.msra.mxu0 %v50
    %801 = vmatpush.msra.mxu0 %v49
    %802 = vmatpush.msra.mxu0 %v48
    %803 = vmatmul.f32.gmra.mxu0 %v785
    %v804 = vpop.f32.mrf.mxu0
    %v805 = vadd.f32 0.0, %v804
    %806 = vdwg.mxu0
    %v807 = vadd.f32 %v96, %v805
    %v808 = vxor.u32 %v807, 2147483648
    %v809 = vmul.f32 %v808, 1.442695
    %v810 = vpow.pop %v809
    %v811 = vadd.f32 %v810, 1.0
    %v812 = vrcp.pop %v811
    %v813 = vmul.f32 %v811, %v812
    %v814 = vsub.f32 1.0, %v813
    %v815 = vmul.f32 %v812, %v814
    %v816 = vadd.f32 %v812, %v815
    %vm817 = vweird.f32 %v811
    %vm818 = vweird.f32 %v812
    %vm819 = vmor %vm817, %vm818
    %v820 = vsel %vm819, %v812, %v816
    %v821 = vand.u32 2147483647, %v811
    %vm822 = vcmp.eq.f32.partialorder %v821, 8.507059e+37
    %v823 = vand.u32 %v811, 2147483648
    %v824 = vor.u32 1.1754944e-38, %v823
    %v825 = vsel %vm822, %v824, %v820
    %v826 = vmul.f32 1.0, %v825
    %v827 = vtanh.pop %v807
    %v829 = vrot.slane %v673, 6
    %v831 = vmul.f32 %v826, %v829
    %833 = vrot.lane.b32.xlu0 %v827, 64
    %v834 = vpop.permute.xlu0 %833
    %v836 = vmul.f32 %v826, %v834
    %838 = vrot.lane.b32.xlu0 %v836, 32
    %v839 = vpop.permute.xlu0 %838
    %v841 = vadd.f32 %v831, %v839
    %v842 = vtanh.pop %v841
    %844 = vrot.lane.b32.xlu0 %v842, 64
    %v845 = vpop.permute.xlu0 %844
    %v847 = vmul.f32 %v826, %v845
    %849 = vrot.lane.b32.xlu0 %v847, 32
    %v850 = vpop.permute.xlu0 %849
    %852 = vrot.lane.b32.xlu0 %v749, 64
    %v853 = vpop.permute.xlu0 %852
    %v855 = vsel %vm68, %v850, %v853
    %v857 = vsel %vm164, %v855, 0
    %859 = vmatpush.msra.mxu0 0.0
    %860 = vmatpush.msra.mxu0 0.0
    %861 = vmatpush.msra.mxu0 0.0
    %862 = vmatpush.msra.mxu0 0.0
    %863 = vmatpush.msra.mxu0 0.0
    %864 = vmatpush.msra.mxu0 0.0
    %865 = vmatpush.msra.mxu0 0.0
    %866 = vmatpush.msra.mxu0 0.0
    %867 = vmatpush.msra.mxu0 %v59
    %868 = vmatpush.msra.mxu0 %v58
    %869 = vmatpush.msra.mxu0 %v57
    %870 = vmatpush.msra.mxu0 %v56
    %871 = vmatpush.msra.mxu0 %v55
    %872 = vmatpush.msra.mxu0 %v54
    %873 = vmatpush.msra.mxu0 %v53
    %874 = vmatpush.msra.mxu0 %v52
    %875 = vmatmul.f32.gmra.mxu0 %v857
    %v876 = vpop.f32.mrf.mxu0
    %v877 = vadd.f32 %v63, %v876
    %878 = vdwg.mxu0
    %v879 = vxor.u32 %v877, 2147483648
    %v880 = vmul.f32 %v879, 1.442695
    %v881 = vpow.pop %v880
    %v882 = vadd.f32 %v881, 1.0
    %v883 = vrcp.pop %v882
    %v884 = vmul.f32 %v882, %v883
    %v885 = vsub.f32 1.0, %v884
    %v886 = vmul.f32 %v883, %v885
    %v887 = vadd.f32 %v883, %v886
    %vm888 = vweird.f32 %v882
    %vm889 = vweird.f32 %v883
    %vm890 = vmor %vm888, %vm889
    %v891 = vsel %vm890, %v883, %v887
    %v892 = vand.u32 2147483647, %v882
    %vm893 = vcmp.eq.f32.partialorder %v892, 8.507059e+37
    %v894 = vand.u32 %v882, 2147483648
    %v895 = vor.u32 1.1754944e-38, %v894
    %v896 = vsel %vm893, %v895, %v891
    %v897 = vmul.f32 1.0, %v896
    %v898 = vtanh.pop %v877
    %v899 = vmul.f32 %v897, %v743
    %901 = vrot.lane.b32.xlu0 %v898, 64
    %v902 = vpop.permute.xlu0 %901
    %v904 = vmul.f32 %v897, %v902
    %906 = vrot.lane.b32.xlu0 %v904, 32
    %v907 = vpop.permute.xlu0 %906
    %v909 = vadd.f32 %v899, %v907
    %v910 = vtanh.pop %v909
    %912 = vrot.lane.b32.xlu0 %v910, 64
    %v913 = vpop.permute.xlu0 %912
    %v915 = vmul.f32 %v897, %v913
    %917 = vrot.lane.b32.xlu0 %v915, 32
    %v918 = vpop.permute.xlu0 %917
    %v920 = vsel %vm229, %v918, 0.0
    %921 = vadd.xlane.f32.xlu0 %v920
    %v922 = vpop.xlane.xlu0 %921
    %v923 = vmul.f32 %v922, %v239
    %v924 = vsub.f32 %v915, %v923
    %v925 = vmul.f32 %v924, %v924
    %927 = vrot.lane.b32.xlu0 %v925, 32
    %v928 = vpop.permute.xlu0 %927
    %v930 = vsel %vm229, %v928, 0.0
    %931 = vadd.xlane.f32.xlu0 %v930
    %v932 = vpop.xlane.xlu0 %931
    %v933 = vmul.f32 %v932, %v239
    %v934 = vadd.f32 %v933, 1e-05
    %v935 = vrsqrt.pop %v934
    %v936 = vmul.f32 %v935, %v934
    %v937 = vmul.f32 %v936, %v935
    %v938 = vmul.f32 0.5, %v937
    %v939 = vsub.f32 1.5, %v938
    %v940 = vmul.f32 %v935, %v939
    %vm941 = vweird.f32 %v934
    %vm942 = vweird.f32 %v935
    %vm943 = vmor %vm941, %vm942
    %v944 = vsel %vm943, %v935, %v940
    %v945 = vmul.f32 %v924, %v944
    %v946 = vmul.f32 %v945, %v265
    %v947 = vadd.f32 %v946, %v269
    %v948 = vsel %vm68, %v850, 0
    %950 = vmatpush.msra.mxu0 0.0
    %951 = vmatpush.msra.mxu0 0.0
    %952 = vmatpush.msra.mxu0 0.0
    %953 = vmatpush.msra.mxu0 0.0
    %954 = vmatpush.msra.mxu0 0.0
    %955 = vmatpush.msra.mxu0 0.0
    %956 = vmatpush.msra.mxu0 0.0
    %957 = vmatpush.msra.mxu0 0.0
    %958 = vmatpush.msra.mxu0 0.0
    %959 = vmatpush.msra.mxu0 0.0
    %960 = vmatpush.msra.mxu0 0.0
    %961 = vmatpush.msra.mxu0 0.0
    %962 = vmatpush.msra.mxu0 %v51
    %963 = vmatpush.msra.mxu0 %v50
    %964 = vmatpush.msra.mxu0 %v49
    %965 = vmatpush.msra.mxu0 %v48
    %966 = vmatmul.f32.gmra.mxu0 %v948
    %v967 = vpop.f32.mrf.mxu0
    %v968 = vadd.f32 0.0, %v967
    %969 = vdwg.mxu0
    %v971 = vrot.slane %v968, 6
    %v973 = vadd.f32 %v96, %v971
    %v974 = vxor.u32 %v973, 2147483648
    %v975 = vmul.f32 %v974, 1.442695
    %v976 = vpow.pop %v975
    %v977 = vadd.f32 %v976, 1.0
    %v978 = vrcp.pop %v977
    %v979 = vmul.f32 %v977, %v978
    %v980 = vsub.f32 1.0, %v979
    %v981 = vmul.f32 %v978, %v980
    %v982 = vadd.f32 %v978, %v981
    %vm983 = vweird.f32 %v977
    %vm984 = vweird.f32 %v978
    %vm985 = vmor %vm983, %vm984
    %v986 = vsel %vm985, %v978, %v982
    %v987 = vand.u32 2147483647, %v977
    %vm988 = vcmp.eq.f32.partialorder %v987, 8.507059e+37
    %v989 = vand.u32 %v977, 2147483648
    %v990 = vor.u32 1.1754944e-38, %v989
    %v991 = vsel %vm988, %v990, %v986
    %v992 = vmul.f32 1.0, %v991
    %v993 = vtanh.pop %v973
    %v995 = vrot.slane %v841, 6
    %v997 = vmul.f32 %v992, %v995
    %999 = vrot.lane.b32.xlu0 %v993, 64
    %v1000 = vpop.permute.xlu0 %999
    %v1002 = vmul.f32 %v992, %v1000
    %1004 = vrot.lane.b32.xlu0 %v1002, 32
    %v1005 = vpop.permute.xlu0 %1004
    %v1007 = vadd.f32 %v997, %v1005
    %v1008 = vtanh.pop %v1007
    %1010 = vrot.lane.b32.xlu0 %v1008, 64
    %v1011 = vpop.permute.xlu0 %1010
    %v1013 = vmul.f32 %v992, %v1011
    %1015 = vrot.lane.b32.xlu0 %v1013, 32
    %v1016 = vpop.permute.xlu0 %1015
    %v1018 = vrot.slane %v915, 6
    %1019 = vrot.lane.b32.xlu0 %v1018, 64
    %v1020 = vpop.permute.xlu0 %1019
    %v1022 = vsel %vm68, %v1016, %v1020
    %v1024 = vrot.slane %v1022, 2
    %v1025 = vsel %vm164, %v1024, 0
    %1027 = vmatpush.msra.mxu0 0.0
    %1028 = vmatpush.msra.mxu0 0.0
    %1029 = vmatpush.msra.mxu0 0.0
    %1030 = vmatpush.msra.mxu0 0.0
    %1031 = vmatpush.msra.mxu0 0.0
    %1032 = vmatpush.msra.mxu0 0.0
    %1033 = vmatpush.msra.mxu0 0.0
    %1034 = vmatpush.msra.mxu0 0.0
    %1035 = vmatpush.msra.mxu0 %v59
    %1036 = vmatpush.msra.mxu0 %v58
    %1037 = vmatpush.msra.mxu0 %v57
    %1038 = vmatpush.msra.mxu0 %v56
    %1039 = vmatpush.msra.mxu0 %v55
    %1040 = vmatpush.msra.mxu0 %v54
    %1041 = vmatpush.msra.mxu0 %v53
    %1042 = vmatpush.msra.mxu0 %v52
    %1043 = vmatmul.f32.gmra.mxu0 %v1025
    %v1044 = vpop.f32.mrf.mxu0
    %v1045 = vadd.f32 %v63, %v1044
    %1046 = vdwg.mxu0
    %v1047 = vxor.u32 %v1045, 2147483648
    %v1048 = vmul.f32 %v1047, 1.442695
    %v1049 = vpow.pop %v1048
    %v1050 = vadd.f32 %v1049, 1.0
    %v1051 = vrcp.pop %v1050
    %v1052 = vmul.f32 %v1050, %v1051
    %v1053 = vsub.f32 1.0, %v1052
    %v1054 = vmul.f32 %v1051, %v1053
    %v1055 = vadd.f32 %v1051, %v1054
    %vm1056 = vweird.f32 %v1050
    %vm1057 = vweird.f32 %v1051
    %vm1058 = vmor %vm1056, %vm1057
    %v1059 = vsel %vm1058, %v1051, %v1055
    %v1060 = vand.u32 2147483647, %v1050
    %vm1061 = vcmp.eq.f32.partialorder %v1060, 8.507059e+37
    %v1062 = vand.u32 %v1050, 2147483648
    %v1063 = vor.u32 1.1754944e-38, %v1062
    %v1064 = vsel %vm1061, %v1063, %v1059
    %v1065 = vmul.f32 1.0, %v1064
    %v1066 = vtanh.pop %v1045
    %v1067 = vmul.f32 %v1065, %v909
    %1069 = vrot.lane.b32.xlu0 %v1066, 64
    %v1070 = vpop.permute.xlu0 %1069
    %v1072 = vmul.f32 %v1065, %v1070
    %1074 = vrot.lane.b32.xlu0 %v1072, 32
    %v1075 = vpop.permute.xlu0 %1074
    %v1077 = vadd.f32 %v1067, %v1075
    %v1078 = vtanh.pop %v1077
    %1080 = vrot.lane.b32.xlu0 %v1078, 64
    %v1081 = vpop.permute.xlu0 %1080
    %v1083 = vmul.f32 %v1065, %v1081
    %1085 = vrot.lane.b32.xlu0 %v1083, 32
    %v1086 = vpop.permute.xlu0 %1085
    %v1088 = vsel %vm229, %v1086, 0.0
    %1089 = vadd.xlane.f32.xlu0 %v1088
    %v1090 = vpop.xlane.xlu0 %1089
    %v1091 = vmul.f32 %v1090, %v239
    %v1092 = vsub.f32 %v1083, %v1091
    %v1093 = vmul.f32 %v1092, %v1092
    %1095 = vrot.lane.b32.xlu0 %v1093, 32
    %v1096 = vpop.permute.xlu0 %1095
    %v1098 = vsel %vm229, %v1096, 0.0
    %1099 = vadd.xlane.f32.xlu0 %v1098
    %v1100 = vpop.xlane.xlu0 %1099
    %v1101 = vmul.f32 %v1100, %v239
    %v1102 = vadd.f32 %v1101, 1e-05
    %v1103 = vrsqrt.pop %v1102
    %v1104 = vmul.f32 %v1103, %v1102
    %v1105 = vmul.f32 %v1104, %v1103
    %v1106 = vmul.f32 0.5, %v1105
    %v1107 = vsub.f32 1.5, %v1106
    %v1108 = vmul.f32 %v1103, %v1107
    %vm1109 = vweird.f32 %v1102
    %vm1110 = vweird.f32 %v1103
    %vm1111 = vmor %vm1109, %vm1110
    %v1112 = vsel %vm1111, %v1103, %v1108
    %v1113 = vmul.f32 %v1092, %v1112
    %v1114 = vmul.f32 %v1113, %v265
    %v1115 = vadd.f32 %v1114, %v269
    %v1116 = vrot.slane %v1013, 2
    %1117 = vrot.lane.b32.xlu0 %v1116, 32
    %v1118 = vpop.permute.xlu0 %1117
    %v1119 = vsel %vm68, %v1118, 0
    %1121 = vmatpush.msra.mxu0 0.0
    %1122 = vmatpush.msra.mxu0 0.0
    %1123 = vmatpush.msra.mxu0 0.0
    %1124 = vmatpush.msra.mxu0 0.0
    %1125 = vmatpush.msra.mxu0 0.0
    %1126 = vmatpush.msra.mxu0 0.0
    %1127 = vmatpush.msra.mxu0 0.0
    %1128 = vmatpush.msra.mxu0 0.0
    %1129 = vmatpush.msra.mxu0 0.0
    %1130 = vmatpush.msra.mxu0 0.0
    %1131 = vmatpush.msra.mxu0 0.0
    %1132 = vmatpush.msra.mxu0 0.0
    %1133 = vmatpush.msra.mxu0 %v51
    %1134 = vmatpush.msra.mxu0 %v50
    %1135 = vmatpush.msra.mxu0 %v49
    %1136 = vmatpush.msra.mxu0 %v48
    %1137 = vmatmul.f32.gmra.mxu0 %v1119
    %v1138 = vpop.f32.mrf.mxu0
    %v1139 = vadd.f32 0.0, %v1138
    %1140 = vdwg.mxu0
    %v1142 = vrot.slane %v1139, 4
    %v1144 = vadd.f32 %v96, %v1142
    %v1145 = vxor.u32 %v1144, 2147483648
    %v1146 = vmul.f32 %v1145, 1.442695
    %v1147 = vpow.pop %v1146
    %v1148 = vadd.f32 %v1147, 1.0
    %v1149 = vrcp.pop %v1148
    %v1150 = vmul.f32 %v1148, %v1149
    %v1151 = vsub.f32 1.0, %v1150
    %v1152 = vmul.f32 %v1149, %v1151
    %v1153 = vadd.f32 %v1149, %v1152
    %vm1154 = vweird.f32 %v1148
    %vm1155 = vweird.f32 %v1149
    %vm1156 = vmor %vm1154, %vm1155
    %v1157 = vsel %vm1156, %v1149, %v1153
    %v1158 = vand.u32 2147483647, %v1148
    %vm1159 = vcmp.eq.f32.partialorder %v1158, 8.507059e+37
    %v1160 = vand.u32 %v1148, 2147483648
    %v1161 = vor.u32 1.1754944e-38, %v1160
    %v1162 = vsel %vm1159, %v1161, %v1157
    %v1163 = vmul.f32 1.0, %v1162
    %v1164 = vtanh.pop %v1144
    %v1166 = vrot.slane %v1007, 6
    %v1168 = vmul.f32 %v1163, %v1166
    %1170 = vrot.lane.b32.xlu0 %v1164, 64
    %v1171 = vpop.permute.xlu0 %1170
    %v1173 = vmul.f32 %v1163, %v1171
    %1175 = vrot.lane.b32.xlu0 %v1173, 32
    %v1176 = vpop.permute.xlu0 %1175
    %v1178 = vadd.f32 %v1168, %v1176
    %v1179 = vtanh.pop %v1178
    %1181 = vrot.lane.b32.xlu0 %v1179, 64
    %v1182 = vpop.permute.xlu0 %1181
    %v1184 = vmul.f32 %v1163, %v1182
    %1186 = vrot.lane.b32.xlu0 %v1184, 32
    %v1187 = vpop.permute.xlu0 %1186
    %v1189 = vrot.slane %v1083, 4
    %1190 = vrot.lane.b32.xlu0 %v1189, 64
    %v1191 = vpop.permute.xlu0 %1190
    %v1193 = vsel %vm68, %v1187, %v1191
    %v1195 = vrot.slane %v1193, 4
    %v1196 = vsel %vm164, %v1195, 0
    %1198 = vmatpush.msra.mxu0 0.0
    %1199 = vmatpush.msra.mxu0 0.0
    %1200 = vmatpush.msra.mxu0 0.0
    %1201 = vmatpush.msra.mxu0 0.0
    %1202 = vmatpush.msra.mxu0 0.0
    %1203 = vmatpush.msra.mxu0 0.0
    %1204 = vmatpush.msra.mxu0 0.0
    %1205 = vmatpush.msra.mxu0 0.0
    %1206 = vmatpush.msra.mxu0 %v59
    %1207 = vmatpush.msra.mxu0 %v58
    %1208 = vmatpush.msra.mxu0 %v57
    %1209 = vmatpush.msra.mxu0 %v56
    %1210 = vmatpush.msra.mxu0 %v55
    %1211 = vmatpush.msra.mxu0 %v54
    %1212 = vmatpush.msra.mxu0 %v53
    %1213 = vmatpush.msra.mxu0 %v52
    %1214 = vmatmul.f32.gmra.mxu0 %v1196
    %v1215 = vpop.f32.mrf.mxu0
    %v1216 = vadd.f32 %v63, %v1215
    %1217 = vdwg.mxu0
    %v1218 = vxor.u32 %v1216, 2147483648
    %v1219 = vmul.f32 %v1218, 1.442695
    %v1220 = vpow.pop %v1219
    %v1221 = vadd.f32 %v1220, 1.0
    %v1222 = vrcp.pop %v1221
    %v1223 = vmul.f32 %v1221, %v1222
    %v1224 = vsub.f32 1.0, %v1223
    %v1225 = vmul.f32 %v1222, %v1224
    %v1226 = vadd.f32 %v1222, %v1225
    %vm1227 = vweird.f32 %v1221
    %vm1228 = vweird.f32 %v1222
    %vm1229 = vmor %vm1227, %vm1228
    %v1230 = vsel %vm1229, %v1222, %v1226
    %v1231 = vand.u32 2147483647, %v1221
    %vm1232 = vcmp.eq.f32.partialorder %v1231, 8.507059e+37
    %v1233 = vand.u32 %v1221, 2147483648
    %v1234 = vor.u32 1.1754944e-38, %v1233
    %v1235 = vsel %vm1232, %v1234, %v1230
    %v1236 = vmul.f32 1.0, %v1235
    %v1237 = vtanh.pop %v1216
    %v1238 = vmul.f32 %v1236, %v1077
    %1240 = vrot.lane.b32.xlu0 %v1237, 64
    %v1241 = vpop.permute.xlu0 %1240
    %v1243 = vmul.f32 %v1236, %v1241
    %1245 = vrot.lane.b32.xlu0 %v1243, 32
    %v1246 = vpop.permute.xlu0 %1245
    %v1248 = vadd.f32 %v1238, %v1246
    %v1249 = vtanh.pop %v1248
    %1251 = vrot.lane.b32.xlu0 %v1249, 64
    %v1252 = vpop.permute.xlu0 %1251
    %v1254 = vmul.f32 %v1236, %v1252
    %1256 = vrot.lane.b32.xlu0 %v1254, 32
    %v1257 = vpop.permute.xlu0 %1256
    %v1259 = vsel %vm229, %v1257, 0.0
    %1260 = vadd.xlane.f32.xlu0 %v1259
    %v1261 = vpop.xlane.xlu0 %1260
    %v1262 = vmul.f32 %v1261, %v239
    %v1263 = vsub.f32 %v1254, %v1262
    %v1264 = vmul.f32 %v1263, %v1263
    %1266 = vrot.lane.b32.xlu0 %v1264, 32
    %v1267 = vpop.permute.xlu0 %1266
    %v1269 = vsel %vm229, %v1267, 0.0
    %1270 = vadd.xlane.f32.xlu0 %v1269
    %v1271 = vpop.xlane.xlu0 %1270
    %v1272 = vmul.f32 %v1271, %v239
    %v1273 = vadd.f32 %v1272, 1e-05
    %v1274 = vrsqrt.pop %v1273
    %v1275 = vmul.f32 %v1274, %v1273
    %v1276 = vmul.f32 %v1275, %v1274
    %v1277 = vmul.f32 0.5, %v1276
    %v1278 = vsub.f32 1.5, %v1277
    %v1279 = vmul.f32 %v1274, %v1278
    %vm1280 = vweird.f32 %v1273
    %vm1281 = vweird.f32 %v1274
    %vm1282 = vmor %vm1280, %vm1281
    %v1283 = vsel %vm1282, %v1274, %v1279
    %v1284 = vmul.f32 %v1263, %v1283
    %v1285 = vmul.f32 %v1284, %v265
    %v1286 = vadd.f32 %v1285, %v269
    %v1287 = vrot.slane %v1184, 4
    %1288 = vrot.lane.b32.xlu0 %v1287, 32
    %v1289 = vpop.permute.xlu0 %1288
    %v1290 = vsel %vm68, %v1289, 0
    %1292 = vmatpush.msra.mxu0 0.0
    %1293 = vmatpush.msra.mxu0 0.0
    %1294 = vmatpush.msra.mxu0 0.0
    %1295 = vmatpush.msra.mxu0 0.0
    %1296 = vmatpush.msra.mxu0 0.0
    %1297 = vmatpush.msra.mxu0 0.0
    %1298 = vmatpush.msra.mxu0 0.0
    %1299 = vmatpush.msra.mxu0 0.0
    %1300 = vmatpush.msra.mxu0 0.0
    %1301 = vmatpush.msra.mxu0 0.0
    %1302 = vmatpush.msra.mxu0 0.0
    %1303 = vmatpush.msra.mxu0 0.0
    %1304 = vmatpush.msra.mxu0 %v51
    %1305 = vmatpush.msra.mxu0 %v50
    %1306 = vmatpush.msra.mxu0 %v49
    %1307 = vmatpush.msra.mxu0 %v48
    %1308 = vmatmul.f32.gmra.mxu0 %v1290
    %v1309 = vpop.f32.mrf.mxu0
    %v1310 = vadd.f32 0.0, %v1309
    %1311 = vdwg.mxu0
    %v1313 = vrot.slane %v1310, 2
    %v1315 = vadd.f32 %v96, %v1313
    %v1316 = vxor.u32 %v1315, 2147483648
    %v1317 = vmul.f32 %v1316, 1.442695
    %v1318 = vpow.pop %v1317
    %v1319 = vadd.f32 %v1318, 1.0
    %v1320 = vrcp.pop %v1319
    %v1321 = vmul.f32 %v1319, %v1320
    %v1322 = vsub.f32 1.0, %v1321
    %v1323 = vmul.f32 %v1320, %v1322
    %v1324 = vadd.f32 %v1320, %v1323
    %vm1325 = vweird.f32 %v1319
    %vm1326 = vweird.f32 %v1320
    %vm1327 = vmor %vm1325, %vm1326
    %v1328 = vsel %vm1327, %v1320, %v1324
    %v1329 = vand.u32 2147483647, %v1319
    %vm1330 = vcmp.eq.f32.partialorder %v1329, 8.507059e+37
    %v1331 = vand.u32 %v1319, 2147483648
    %v1332 = vor.u32 1.1754944e-38, %v1331
    %v1333 = vsel %vm1330, %v1332, %v1328
    %v1334 = vmul.f32 1.0, %v1333
    %v1335 = vtanh.pop %v1315
    %v1337 = vrot.slane %v1178, 6
    %v1339 = vmul.f32 %v1334, %v1337
    %1341 = vrot.lane.b32.xlu0 %v1335, 64
    %v1342 = vpop.permute.xlu0 %1341
    %v1344 = vmul.f32 %v1334, %v1342
    %1346 = vrot.lane.b32.xlu0 %v1344, 32
    %v1347 = vpop.permute.xlu0 %1346
    %v1349 = vadd.f32 %v1339, %v1347
    %v1350 = vtanh.pop %v1349
    %1352 = vrot.lane.b32.xlu0 %v1350, 64
    %v1353 = vpop.permute.xlu0 %1352
    %v1355 = vmul.f32 %v1334, %v1353
    %1357 = vrot.lane.b32.xlu0 %v1355, 32
    %v1358 = vpop.permute.xlu0 %1357
    %v1360 = vrot.slane %v1254, 2
    %1361 = vrot.lane.b32.xlu0 %v1360, 64
    %v1362 = vpop.permute.xlu0 %1361
    %v1364 = vsel %vm68, %v1358, %v1362
    %v1366 = vrot.slane %v1364, 6
    %v1367 = vsel %vm164, %v1366, 0
    %1369 = vmatpush.msra.mxu0 0.0
    %1370 = vmatpush.msra.mxu0 0.0
    %1371 = vmatpush.msra.mxu0 0.0
    %1372 = vmatpush.msra.mxu0 0.0
    %1373 = vmatpush.msra.mxu0 0.0
    %1374 = vmatpush.msra.mxu0 0.0
    %1375 = vmatpush.msra.mxu0 0.0
    %1376 = vmatpush.msra.mxu0 0.0
    %1377 = vmatpush.msra.mxu0 %v59
    %1378 = vmatpush.msra.mxu0 %v58
    %1379 = vmatpush.msra.mxu0 %v57
    %1380 = vmatpush.msra.mxu0 %v56
    %1381 = vmatpush.msra.mxu0 %v55
    %1382 = vmatpush.msra.mxu0 %v54
    %1383 = vmatpush.msra.mxu0 %v53
    %1384 = vmatpush.msra.mxu0 %v52
    %1385 = vmatmul.f32.gmra.mxu0 %v1367
    %v1386 = vpop.f32.mrf.mxu0
    %v1387 = vadd.f32 %v63, %v1386
    %1388 = vdwg.mxu0
    %v1389 = vxor.u32 %v1387, 2147483648
    %v1390 = vmul.f32 %v1389, 1.442695
    %v1391 = vpow.pop %v1390
    %v1392 = vadd.f32 %v1391, 1.0
    %v1393 = vrcp.pop %v1392
    %v1394 = vmul.f32 %v1392, %v1393
    %v1395 = vsub.f32 1.0, %v1394
    %v1396 = vmul.f32 %v1393, %v1395
    %v1397 = vadd.f32 %v1393, %v1396
    %vm1398 = vweird.f32 %v1392
    %vm1399 = vweird.f32 %v1393
    %vm1400 = vmor %vm1398, %vm1399
    %v1401 = vsel %vm1400, %v1393, %v1397
    %v1402 = vand.u32 2147483647, %v1392
    %vm1403 = vcmp.eq.f32.partialorder %v1402, 8.507059e+37
    %v1404 = vand.u32 %v1392, 2147483648
    %v1405 = vor.u32 1.1754944e-38, %v1404
    %v1406 = vsel %vm1403, %v1405, %v1401
    %v1407 = vmul.f32 1.0, %v1406
    %v1408 = vtanh.pop %v1387
    %v1409 = vmul.f32 %v1407, %v1248
    %1411 = vrot.lane.b32.xlu0 %v1408, 64
    %v1412 = vpop.permute.xlu0 %1411
    %v1414 = vmul.f32 %v1407, %v1412
    %1416 = vrot.lane.b32.xlu0 %v1414, 32
    %v1417 = vpop.permute.xlu0 %1416
    %v1419 = vadd.f32 %v1409, %v1417
    %v1420 = vtanh.pop %v1419
    %1422 = vrot.lane.b32.xlu0 %v1420, 64
    %v1423 = vpop.permute.xlu0 %1422
    %v1425 = vmul.f32 %v1407, %v1423
    %1427 = vrot.lane.b32.xlu0 %v1425, 32
    %v1428 = vpop.permute.xlu0 %1427
    %v1430 = vsel %vm229, %v1428, 0.0
    %1431 = vadd.xlane.f32.xlu0 %v1430
    %v1432 = vpop.xlane.xlu0 %1431
    %v1433 = vmul.f32 %v1432, %v239
    %v1434 = vsub.f32 %v1425, %v1433
    %v1435 = vmul.f32 %v1434, %v1434
    %1437 = vrot.lane.b32.xlu0 %v1435, 32
    %v1438 = vpop.permute.xlu0 %1437
    %v1440 = vsel %vm229, %v1438, 0.0
    %1441 = vadd.xlane.f32.xlu0 %v1440
    %v1442 = vpop.xlane.xlu0 %1441
    %v1443 = vmul.f32 %v1442, %v239
    %v1444 = vadd.f32 %v1443, 1e-05
    %v1445 = vrsqrt.pop %v1444
    %v1446 = vmul.f32 %v1445, %v1444
    %v1447 = vmul.f32 %v1446, %v1445
    %v1448 = vmul.f32 0.5, %v1447
    %v1449 = vsub.f32 1.5, %v1448
    %v1450 = vmul.f32 %v1445, %v1449
    %vm1451 = vweird.f32 %v1444
    %vm1452 = vweird.f32 %v1445
    %vm1453 = vmor %vm1451, %vm1452
    %v1454 = vsel %vm1453, %v1445, %v1450
    %v1455 = vmul.f32 %v1434, %v1454
    %v1456 = vmul.f32 %v1455, %v265
    %v1457 = vadd.f32 %v1456, %v269
    %1459 = vrot.lane.b32.xlu0 %v271, 32
    %v1460 = vpop.permute.xlu0 %1459
    %1463 = vrot.lane.b32.xlu0 %v439, 64
    %v1464 = vpop.permute.xlu0 %1463
    %1467 = vrot.lane.b32.xlu0 %v610, 96
    %v1468 = vpop.permute.xlu0 %1467
    %1471 = vrot.lane.b32.xlu0 %v947, 32
    %v1472 = vpop.permute.xlu0 %1471
    %1475 = vrot.lane.b32.xlu0 %v1115, 64
    %v1476 = vpop.permute.xlu0 %1475
    %1479 = vrot.lane.b32.xlu0 %v1286, 96
    %v1480 = vpop.permute.xlu0 %1479
    %v1482 = vsel %vm68, %v1460, %v1464
    %v1483 = vsel %vm164, %v1482, %v1468
    %vm1484 = vcmask 785408
    %v1485 = vsel %vm1484, %v1483, %v781
    %v1486 = vsel %vm68, %v1472, %v1476
    %v1487 = vsel %vm164, %v1486, %v1480
    %v1488 = vsel %vm1484, %v1487, %v1457
    %v1491 = vrot.slane %v1488, 6
    %vm1492 = vcmask 1041408
    %v1493 = vsel %vm1492, %v1485, %v1491
    %1495 = vst [vmem:[#allocation7] sm:$0xf] %v1493
    // Predicated region
    $region18: #{tpu_custom_call.1} parent=1 // pred_check
      _
    $region19: #{tpu_custom_call.1} parent=1 // pred_check_branch
      %1497 = sbr.rel (0) target = $region21
    $region20: #{tpu_custom_call.1} parent=1 // pred_region
      %1499 = vsyncadd [#allocation4], 0
      %s1501 = sshll.u32 [#allocation7], 4
      %s1502 = int_to_ptr.vmem [resolvable:$true] %s1501
      %s1503 = sshll.u32 %s2, 4
      %s1504 = int_to_ptr.hbm [resolvable:$true] %s1503
      %1506 = dma.vmem_to_hbm [thread:$0]  %s1502, 64, %s1504, [#allocation4]
    $region21: #{tpu_custom_call.1} parent=1 // pred_fallthru
      _
    // Predicated region
    $region22: #{tpu_custom_call.1} parent=1 // pred_check
      _
    $region23: #{tpu_custom_call.1} parent=1 // pred_check_branch
      %1508 = sbr.rel (0) target = $region25
    $region24: #{tpu_custom_call.1} parent=1 // pred_region
      %1510 = dma.done [#allocation4], 64
    $region25: #{tpu_custom_call.1} parent=1 // pred_fallthru
      _
    %1511 = vsyncpa [#allocation3], 1
    %1512 = vsyncpa [#allocation6], 1
    %1513 = vsyncpa [#allocation4], 1

</llo_original>
